<compile_context>
chip_gen: v7x
topology: tpu7x:2x2x1
jax: 0.10.0
libtpu: 0.0.40
codegen_flags: <defaults>
</compile_context>

<pallas_src>
import functools
import math

import jax
import jax.numpy as jnp
from jax.experimental import pallas as pl
from jax.experimental.pallas import tpu as pltpu


def _harmonics(c1, s1, n_harm):
    """cos(n*theta), sin(n*theta) for n = 0..n_harm-1 via angle addition.

    c1 = cos(theta), s1 = sin(theta) are the only transcendentals spent;
    everything else is VPU mul/add (serial chain of length n_harm-1).
    """
    cos_list = [jnp.ones_like(c1)]
    sin_list = [jnp.zeros_like(s1)]
    for _ in range(n_harm - 1):
        c_prev = cos_list[-1]
        s_prev = sin_list[-1]
        cos_list.append(c_prev * c1 - s_prev * s1)
        sin_list.append(s_prev * c1 + c_prev * s1)
    return cos_list, sin_list


def _nfka_kernel(angk_ref, angq_ref, v_ref, ri_ref, mask_ref, o_ref, mp_ref):
    H = ri_ref.shape[1]
    N = ri_ref.shape[2]
    HD = v_ref.shape[1]
    F = H * 2 * N

    qi = pl.program_id(1)

    # ---- key-side features + first fused MXU dot: once per batch step ----
    @pl.when(qi == 0)
    def _():
        ang_k = angk_ref[...]                       # (H, Sk), sequence on lanes
        c1 = jnp.cos(ang_k)
        s1 = jnp.sin(ang_k)                         # 2 EUP ops total for the key
        ck_cos, ck_sin = _harmonics(c1, s1, N)
        ck = jnp.stack(ck_cos + ck_sin, axis=1)     # (H, 2N, Sk)
        ck2 = ck.reshape(F, ck.shape[-1])           # (H*2N, Sk)

        # one fused dot over all heads: (H*2N, Sk) @ (Sk, H*D)
        m2 = jnp.dot(ck2, v_ref[...], preferred_element_type=jnp.float32)
        m3 = m2.reshape(H, 2 * N, HD)

        mask = mask_ref[...][:, None, :]            # (H, 1, H*D) block-diag select
        a_blk = m3[:, :N, :] * mask                 # cos_k rows (per-head block)
        b_blk = m3[:, N:, :] * mask                 # sin_k rows

        ri = ri_ref[...]                            # (2, H, N) spline values
        r3 = ri[0][:, :, None]
        i3 = ri[1][:, :, None]
        mc = r3 * a_blk - i3 * b_blk                # coeff of cos_q features
        ms = i3 * a_blk + r3 * b_blk                # coeff of sin_q features
        mp_ref[...] = jnp.concatenate([mc, ms], axis=1).reshape(F, HD)

    # ---- query-side features + second fused MXU dot: every Sq tile ----
    ang_q = angq_ref[...]                           # (H, TQ)
    c1q = jnp.cos(ang_q)
    s1q = jnp.sin(ang_q)
    cq_cos, cq_sin = _harmonics(c1q, s1q, N)
    cq = jnp.stack(cq_cos + cq_sin, axis=1).reshape(F, ang_q.shape[-1])  # (F, TQ)

    out = jax.lax.dot_general(cq, mp_ref[...],
                              (((0,), (0,)), ((), ())),
                              preferred_element_type=jnp.float32)        # (TQ, H*D)
    o_ref[...] = out.astype(o_ref.dtype)


def _pick_q_tile(sq, max_tile=512):
    """Sq tile: full if small, else a multiple of 128 that divides Sq."""
    if sq <= max_tile:
        return sq
    t = max_tile
    while t >= 128:
        if sq % t == 0:
            return t
        t -= 128
    return sq


def nfk_attention_pallas(key, value, query, params, h, N):
    """key:(B,Sk,h)  value:(B,Sk,h*D)  query:(B,Sq,h)  ->  (B,Sq,h*D)"""
    B, Sk, _ = key.shape
    Sq = query.shape[1]
    HD = value.shape[-1]
    D = HD // h
    F = h * 2 * N
    f32 = jnp.float32

    # ---------------- tiny wrapper-side glue (small tensors only) ----------------
    # per (batch, head) max over |key| u |query|
    max_qk = jnp.maximum(jnp.max(jnp.abs(key), axis=1),
                         jnp.max(jnp.abs(query), axis=1))                    # (B, h)
    inv_max = 1.0 / jnp.maximum(max_qk, 1e-30)   # guard (ref would NaN on zero head)

    # normalized key/query pre-multiplied by the fundamental frequency delta,
    # laid out (B, h, S) so the sequence sits on the lane axis inside the kernel.
    delta = N * math.pi / (N - 1)
    ang_k = delta * jnp.transpose(key, (0, 2, 1)) * inv_max[:, :, None]      # (B,h,Sk)
    ang_q = delta * jnp.transpose(query, (0, 2, 1)) * inv_max[:, :, None]    # (B,h,Sq)

    # piecewise-linear spline (get_kernel_params + lspline_kernel) evaluated at
    # xx = freqs_x * max_qk — (B, h, N) points against (h, N-1) segments.
    real_amps = params["real_amps"].reshape(h, N - 1).astype(f32)
    imag_amps = params["imag_amps"].reshape(h, N - 1).astype(f32)
    scale = jax.nn.softplus(params["scale_amps"].reshape(h)).astype(f32) + 0.5
    x_amps = jnp.arange(N, dtype=f32) / (N - 1)                              # (N,)
    ax = x_amps[None, :] * scale[:, None]                                    # (h, N)
    zero_col = jnp.zeros((h, 1), f32)
    ay_r = jnp.concatenate([real_amps, zero_col], axis=-1)                   # (h, N)
    ay_i = jnp.concatenate([imag_amps, zero_col], axis=-1)
    slope_r = (ay_r[:, 1:] - ay_r[:, :-1]) / (ax[:, 1:] - ax[:, :-1])        # (h, N-1)
    slope_i = (ay_i[:, 1:] - ay_i[:, :-1]) / (ax[:, 1:] - ax[:, :-1])

    xx = x_amps[None, None, :] * max_qk[:, :, None]                          # (B,h,N)
    xx4 = xx[..., None]                                                      # (B,h,N,1)
    ax_lo = ax[None, :, None, :-1]
    ax_hi = ax[None, :, None, 1:]
    sel = jnp.logical_and(xx4 >= ax_lo, xx4 < ax_hi)                         # (B,h,N,N-1)
    val_r = ay_r[None, :, None, :-1] + (xx4 - ax_lo) * slope_r[None, :, None, :]
    val_i = ay_i[None, :, None, :-1] + (xx4 - ax_lo) * slope_i[None, :, None, :]
    spl_r = jnp.sum(jnp.where(sel, val_r, 0.0), axis=-1)                     # (B,h,N)
    spl_i = jnp.sum(jnp.where(sel, val_i, 0.0), axis=-1)
    ri = jnp.stack([spl_r, spl_i], axis=1)                                   # (B,2,h,N)

    # block-diagonal head selector for the fused matmuls
    col_head = jnp.arange(HD, dtype=jnp.int32) // D
    mask_h = (jnp.arange(h, dtype=jnp.int32)[:, None]
              == col_head[None, :]).astype(f32)                              # (h, HD)

    # ---------------- grid / tiling / budgets ----------------
    TQ = _pick_q_tile(Sq)
    nq = Sq // TQ

    per_step = 4 * (2 * (Sk * HD + h * Sk + h * TQ + 2 * h * N + TQ * HD) + h * HD)
    slabs = 4 * (2 * F * (Sk + TQ) + 4 * F * HD)
    vmem_limit = int(min(max(3 * (per_step + slabs), 32 * 1024 * 1024),
                         60 * 1024 * 1024))

    flops = 2 * B * F * HD * (Sk + Sq) + 8 * B * h * N * (Sk + Sq)
    transcendentals = 2 * B * h * (Sk + Sq)
    bytes_accessed = (4 * B * (Sk * HD + Sq * HD + h * (Sk + Sq) + 2 * h * N)
                      + 4 * h * HD)
    cost = pl.CostEstimate(flops=flops, transcendentals=transcendentals,
                           bytes_accessed=bytes_accessed)

    out = pl.pallas_call(
        _nfka_kernel,
        out_shape=jax.ShapeDtypeStruct((B, Sq, HD), f32),
        grid=(B, nq),
        in_specs=[
            pl.BlockSpec((None, h, Sk), lambda b, q: (b, 0, 0)),        # ang_k
            pl.BlockSpec((None, h, TQ), lambda b, q: (b, 0, q)),        # ang_q
            pl.BlockSpec((None, Sk, HD), lambda b, q: (b, 0, 0)),       # value
            pl.BlockSpec((None, 2, h, N), lambda b, q: (b, 0, 0, 0)),   # spline r/i
            pl.BlockSpec((h, HD), lambda b, q: (0, 0)),                 # head mask
        ],
        out_specs=pl.BlockSpec((None, TQ, HD), lambda b, q: (b, q, 0)),
        scratch_shapes=[pltpu.VMEM((F, HD), jnp.float32)],
        compiler_params=pltpu.CompilerParams(
            dimension_semantics=("parallel", "arbitrary"),
            vmem_limit_bytes=vmem_limit),
        cost_estimate=cost,
    )(ang_k, ang_q, value.astype(f32), ri, mask_h)

    return out


# ----------------------- pure-JAX reference (mirrors PyTorch) -----------------------
def _lspline_ref(ax, ay, a_scale, xx):
    ax = ax * a_scale
    seg_sel = jnp.logical_and(xx[..., None] >= ax[..., :-1][..., None, :],
                              xx[..., None] < ax[..., 1:][..., None, :])
    slope = ((ay[..., 1:] - ay[..., :-1]) / (ax[..., 1:] - ax[..., :-1]))[..., None, :]
    xy = ay[..., :-1][..., None, :] + (xx[..., None] - ax[..., :-1][..., None, :]) * slope
    return jnp.sum(jnp.where(seg_sel, xy, 0.0), axis=-1)


def nfk_attention_ref(key, value, query, params, h, N):
    B, Sk, _ = key.shape
    Sq = query.shape[1]
    D = value.shape[-1] // h
    k = jnp.transpose(key.reshape(B, Sk, h, 1), (2, 0, 1, 3))
    q = jnp.transpose(query.reshape(B, Sq, h, 1), (2, 0, 1, 3))
    v = jnp.transpose(value.reshape(B, Sk, h, D), (2, 0, 1, 3)).reshape(-1, Sk, D)
    max_qk = jnp.max(jnp.abs(jnp.concatenate([k, q], axis=-2)), axis=-2, keepdims=True)
    k = k / max_qk
    q = q / max_qk
    x_amps = (jnp.arange(N, dtype=jnp.float32) / (N - 1)).reshape(1, 1, 1, N)
    freqs_x = x_amps
    freqs = jnp.tile(x_amps * N * math.pi, (h, 1, 1, 1))
    real_amps = jnp.pad(params["real_amps"], ((0, 0), (0, 0), (0, 0), (0, 1)))
    imag_amps = jnp.pad(params["imag_amps"], ((0, 0), (0, 0), (0, 0), (0, 1)))
    scale_amps = jax.nn.softplus(params["scale_amps"]) + 0.5
    xx = freqs_x * max_qk
    r = _lspline_ref(x_amps, real_amps, scale_amps, xx)
    i = _lspline_ref(x_amps, imag_amps, scale_amps, xx)
    q_p = freqs * q
    k_p = freqs * k
    sq_, cq_ = jnp.sin(q_p), jnp.cos(q_p)
    sk_, ck_ = jnp.sin(k_p), jnp.cos(k_p)
    tq = jnp.concatenate([r * cq_, r * sq_, i * sq_, -i * cq_], -1).reshape(-1, Sq, 4 * N)
    tk = jnp.concatenate([ck_, sk_, ck_, sk_], -1).reshape(-1, Sk, 4 * N)
    kv = jnp.einsum("bks,bkd->bsd", tk, v)
    o = jnp.einsum("bqs,bsd->bqd", tq, kv)
    return jnp.transpose(o.reshape(h, B, Sq, D), (1, 2, 0, 3)).reshape(B, Sq, h * D)


if __name__ == "__main__":
    # small shapes consistent with the module
    B, Sk, Sq = 2, 16, 16
    H, num_hidden, N = 4, 32, 8
    D = num_hidden // H

    rng = jax.random.PRNGKey(0)
    rk, rv, rq = jax.random.split(rng, 3)
    key_in = jax.random.normal(rk, (B, Sk, H), dtype=jnp.float32)
    value_in = jax.random.normal(rv, (B, Sk, num_hidden), dtype=jnp.float32)
    query_in = jax.random.normal(rq, (B, Sq, H), dtype=jnp.float32)

    # deterministic parameter init matching __init__ shapes
    # TODO(synk): init_kernels() is not provided in the source; use a deterministic
    #             smooth placeholder for real_amps.
    j = jnp.arange(N - 1, dtype=jnp.float32)
    real_amps = ((1.0 + 0.5 * jnp.cos(math.pi * j / (N - 1)))[None, :]
                 * (1.0 + 0.1 * jnp.arange(H, dtype=jnp.float32))[:, None])
    params = {
        "real_amps": real_amps.reshape(H, 1, 1, N - 1),
        "imag_amps": jnp.zeros((H, 1, 1, N - 1), jnp.float32),
        "scale_amps": jnp.zeros((H, 1, 1, 1), jnp.float32),
    }

    fwd = jax.jit(nfk_attention_pallas, static_argnums=(4, 5))
    out = fwd(key_in, value_in, query_in, params, H, N)
    out = jax.block_until_ready(out)

    ref = nfk_attention_ref(key_in, value_in, query_in, params, H, N)
    assert out.shape == (B, Sq, num_hidden)
    assert jnp.allclose(out, ref, atol=1e-3, rtol=1e-3), (
        f"max abs err {jnp.max(jnp.abs(out - ref))}")

    print("KERNEL_OK")
</pallas_src>

<mosaic_0001>
module attributes {stable_mosaic.version = 11 : i64} {
  func.func @_nfka_kernel(%arg0: i32, %arg1: i32, %arg2: memref<1x4x16xf32, #tpu.memory_space<vmem>>, %arg3: memref<1x4x16xf32, #tpu.memory_space<vmem>>, %arg4: memref<1x16x32xf32, #tpu.memory_space<vmem>>, %arg5: memref<1x2x4x8xf32, #tpu.memory_space<vmem>>, %arg6: memref<4x32xf32, #tpu.memory_space<vmem>>, %arg7: memref<1x16x32xf32, #tpu.memory_space<vmem>>, %arg8: memref<64x32xf32, #tpu.memory_space<vmem>>) attributes {dimension_semantics = [#tpu.dimension_semantics<parallel>, #tpu.dimension_semantics<arbitrary>], iteration_bounds = array<i64: 2, 1>, scalar_prefetch = 0 : i64, scratch_operands = 1 : i64, tpu.core_type = #tpu.core_type<tc>, window_params = [{transform_indices = @transform_0, window_bounds = array<i64: 1, 4, 16>}, {transform_indices = @transform_1, window_bounds = array<i64: 1, 4, 16>}, {transform_indices = @transform_2, window_bounds = array<i64: 1, 16, 32>}, {transform_indices = @transform_3, window_bounds = array<i64: 1, 2, 4, 8>}, {pipeline_mode = #tpu.pipeline_mode<synchronous>, transform_indices = @transform_4, window_bounds = array<i64: 4, 32>}, {transform_indices = @transform_5, window_bounds = array<i64: 1, 16, 32>}]} {
    %c0_i32 = arith.constant 0 : i32
    %0 = arith.cmpi eq, %arg1, %c0_i32 : i32
    %1 = arith.extui %0 : i1 to i32
    %c0_i32_0 = arith.constant 0 : i32
    %2 = arith.cmpi ne, %1, %c0_i32_0 : i32
    scf.if %2 {
      %c0_10 = arith.constant 0 : index
      %c0_11 = arith.constant 0 : index
      %c0_12 = arith.constant 0 : index
      %74 = vector.load %arg2[%c0_10, %c0_11, %c0_12] : memref<1x4x16xf32, #tpu.memory_space<vmem>>, vector<1x4x16xf32>
      %75 = vector.shape_cast %74 : vector<1x4x16xf32> to vector<4x16xf32>
      %76 = math.cos %75 : vector<4x16xf32>
      %77 = math.sin %75 : vector<4x16xf32>
      %cst_13 = arith.constant 1.000000e+00 : f32
      %78 = vector.broadcast %cst_13 : f32 to vector<4x16xf32>
      %cst_14 = arith.constant 0.000000e+00 : f32
      %79 = vector.broadcast %cst_14 : f32 to vector<4x16xf32>
      %80 = arith.mulf %78, %76 : vector<4x16xf32>
      %81 = arith.mulf %79, %77 : vector<4x16xf32>
      %82 = arith.subf %80, %81 : vector<4x16xf32>
      %83 = arith.mulf %79, %76 : vector<4x16xf32>
      %84 = arith.mulf %78, %77 : vector<4x16xf32>
      %85 = arith.addf %83, %84 : vector<4x16xf32>
      %86 = arith.mulf %82, %76 : vector<4x16xf32>
      %87 = arith.mulf %85, %77 : vector<4x16xf32>
      %88 = arith.subf %86, %87 : vector<4x16xf32>
      %89 = arith.mulf %85, %76 : vector<4x16xf32>
      %90 = arith.mulf %82, %77 : vector<4x16xf32>
      %91 = arith.addf %89, %90 : vector<4x16xf32>
      %92 = arith.mulf %88, %76 : vector<4x16xf32>
      %93 = arith.mulf %91, %77 : vector<4x16xf32>
      %94 = arith.subf %92, %93 : vector<4x16xf32>
      %95 = arith.mulf %91, %76 : vector<4x16xf32>
      %96 = arith.mulf %88, %77 : vector<4x16xf32>
      %97 = arith.addf %95, %96 : vector<4x16xf32>
      %98 = arith.mulf %94, %76 : vector<4x16xf32>
      %99 = arith.mulf %97, %77 : vector<4x16xf32>
      %100 = arith.subf %98, %99 : vector<4x16xf32>
      %101 = arith.mulf %97, %76 : vector<4x16xf32>
      %102 = arith.mulf %94, %77 : vector<4x16xf32>
      %103 = arith.addf %101, %102 : vector<4x16xf32>
      %104 = arith.mulf %100, %76 : vector<4x16xf32>
      %105 = arith.mulf %103, %77 : vector<4x16xf32>
      %106 = arith.subf %104, %105 : vector<4x16xf32>
      %107 = arith.mulf %103, %76 : vector<4x16xf32>
      %108 = arith.mulf %100, %77 : vector<4x16xf32>
      %109 = arith.addf %107, %108 : vector<4x16xf32>
      %110 = arith.mulf %106, %76 : vector<4x16xf32>
      %111 = arith.mulf %109, %77 : vector<4x16xf32>
      %112 = arith.subf %110, %111 : vector<4x16xf32>
      %113 = arith.mulf %109, %76 : vector<4x16xf32>
      %114 = arith.mulf %106, %77 : vector<4x16xf32>
      %115 = arith.addf %113, %114 : vector<4x16xf32>
      %116 = arith.mulf %112, %76 : vector<4x16xf32>
      %117 = arith.mulf %115, %77 : vector<4x16xf32>
      %118 = arith.subf %116, %117 : vector<4x16xf32>
      %119 = arith.mulf %115, %76 : vector<4x16xf32>
      %120 = arith.mulf %112, %77 : vector<4x16xf32>
      %121 = arith.addf %119, %120 : vector<4x16xf32>
      %122 = vector.shape_cast %78 : vector<4x16xf32> to vector<4x1x16xf32>
      %123 = vector.shape_cast %82 : vector<4x16xf32> to vector<4x1x16xf32>
      %124 = vector.shape_cast %88 : vector<4x16xf32> to vector<4x1x16xf32>
      %125 = vector.shape_cast %94 : vector<4x16xf32> to vector<4x1x16xf32>
      %126 = vector.shape_cast %100 : vector<4x16xf32> to vector<4x1x16xf32>
      %127 = vector.shape_cast %106 : vector<4x16xf32> to vector<4x1x16xf32>
      %128 = vector.shape_cast %112 : vector<4x16xf32> to vector<4x1x16xf32>
      %129 = vector.shape_cast %118 : vector<4x16xf32> to vector<4x1x16xf32>
      %130 = vector.shape_cast %79 : vector<4x16xf32> to vector<4x1x16xf32>
      %131 = vector.shape_cast %85 : vector<4x16xf32> to vector<4x1x16xf32>
      %132 = vector.shape_cast %91 : vector<4x16xf32> to vector<4x1x16xf32>
      %133 = vector.shape_cast %97 : vector<4x16xf32> to vector<4x1x16xf32>
      %134 = vector.shape_cast %103 : vector<4x16xf32> to vector<4x1x16xf32>
      %135 = vector.shape_cast %109 : vector<4x16xf32> to vector<4x1x16xf32>
      %136 = vector.shape_cast %115 : vector<4x16xf32> to vector<4x1x16xf32>
      %137 = vector.shape_cast %121 : vector<4x16xf32> to vector<4x1x16xf32>
      %138 = tpu.concatenate %122, %123, %124, %125, %126, %127, %128, %129, %130, %131, %132, %133, %134, %135, %136, %137 in 1 : vector<4x1x16xf32>, vector<4x1x16xf32>, vector<4x1x16xf32>, vector<4x1x16xf32>, vector<4x1x16xf32>, vector<4x1x16xf32>, vector<4x1x16xf32>, vector<4x1x16xf32>, vector<4x1x16xf32>, vector<4x1x16xf32>, vector<4x1x16xf32>, vector<4x1x16xf32>, vector<4x1x16xf32>, vector<4x1x16xf32>, vector<4x1x16xf32>, vector<4x1x16xf32> -> vector<4x16x16xf32>
      %139 = vector.shape_cast %138 : vector<4x16x16xf32> to vector<64x16xf32>
      %c0_15 = arith.constant 0 : index
      %c0_16 = arith.constant 0 : index
      %c0_17 = arith.constant 0 : index
      %140 = vector.load %arg4[%c0_15, %c0_16, %c0_17] : memref<1x16x32xf32, #tpu.memory_space<vmem>>, vector<1x16x32xf32>
      %141 = vector.shape_cast %140 : vector<1x16x32xf32> to vector<16x32xf32>
      %cst_18 = arith.constant dense<0.000000e+00> : vector<64x32xf32>
      %142 = tpu.matmul %139, %141, %cst_18 {dimension_numbers = #tpu.dot_dimension_numbers<[1], [0], [0], [1], [0, 0, 1, 1], [], []>} : vector<64x16xf32>, vector<16x32xf32>, vector<64x32xf32> -> vector<64x32xf32>
      %143 = vector.shape_cast %142 : vector<64x32xf32> to vector<4x16x32xf32>
      %c0_19 = arith.constant 0 : index
      %c0_20 = arith.constant 0 : index
      %144 = vector.load %arg6[%c0_19, %c0_20] : memref<4x32xf32, #tpu.memory_space<vmem>>, vector<4x32xf32>
      %145 = vector.shape_cast %144 : vector<4x32xf32> to vector<4x1x32xf32>
      %146 = vector.extract_strided_slice %143 {offsets = [0, 0, 0], sizes = [4, 8, 32], strides = [1, 1, 1]} : vector<4x16x32xf32> to vector<4x8x32xf32>
      %147 = vector.broadcast %145 : vector<4x1x32xf32> to vector<4x8x32xf32>
      %148 = arith.mulf %146, %147 : vector<4x8x32xf32>
      %149 = vector.extract_strided_slice %143 {offsets = [0, 8, 0], sizes = [4, 8, 32], strides = [1, 1, 1]} : vector<4x16x32xf32> to vector<4x8x32xf32>
      %150 = vector.broadcast %145 : vector<4x1x32xf32> to vector<4x8x32xf32>
      %151 = arith.mulf %149, %150 : vector<4x8x32xf32>
      %c0_21 = arith.constant 0 : index
      %c0_22 = arith.constant 0 : index
      %c0_23 = arith.constant 0 : index
      %c0_24 = arith.constant 0 : index
      %152 = vector.load %arg5[%c0_21, %c0_22, %c0_23, %c0_24] : memref<1x2x4x8xf32, #tpu.memory_space<vmem>>, vector<1x2x4x8xf32>
      %153 = vector.shape_cast %152 : vector<1x2x4x8xf32> to vector<2x4x8xf32>
      %154 = vector.extract_strided_slice %153 {offsets = [0, 0, 0], sizes = [1, 4, 8], strides = [1, 1, 1]} : vector<2x4x8xf32> to vector<1x4x8xf32>
      %155 = vector.shape_cast %154 : vector<1x4x8xf32> to vector<4x8xf32>
      %156 = vector.shape_cast %155 : vector<4x8xf32> to vector<4x8x1xf32>
      %157 = vector.extract_strided_slice %153 {offsets = [1, 0, 0], sizes = [1, 4, 8], strides = [1, 1, 1]} : vector<2x4x8xf32> to vector<1x4x8xf32>
      %158 = vector.shape_cast %157 : vector<1x4x8xf32> to vector<4x8xf32>
      %159 = vector.shape_cast %158 : vector<4x8xf32> to vector<4x8x1xf32>
      %160 = vector.broadcast %156 : vector<4x8x1xf32> to vector<4x8x32xf32>
      %161 = arith.mulf %160, %148 : vector<4x8x32xf32>
      %162 = vector.broadcast %159 : vector<4x8x1xf32> to vector<4x8x32xf32>
      %163 = arith.mulf %162, %151 : vector<4x8x32xf32>
      %164 = arith.subf %161, %163 : vector<4x8x32xf32>
      %165 = vector.broadcast %159 : vector<4x8x1xf32> to vector<4x8x32xf32>
      %166 = arith.mulf %165, %148 : vector<4x8x32xf32>
      %167 = vector.broadcast %156 : vector<4x8x1xf32> to vector<4x8x32xf32>
      %168 = arith.mulf %167, %151 : vector<4x8x32xf32>
      %169 = arith.addf %166, %168 : vector<4x8x32xf32>
      %170 = tpu.concatenate %164, %169 in 1 : vector<4x8x32xf32>, vector<4x8x32xf32> -> vector<4x16x32xf32>
      %171 = vector.shape_cast %170 : vector<4x16x32xf32> to vector<64x32xf32>
      %c0_25 = arith.constant 0 : index
      %c0_26 = arith.constant 0 : index
      %172 = vector.load %arg8[%c0_25, %c0_26] : memref<64x32xf32, #tpu.memory_space<vmem>>, vector<64x32xf32>
      tpu.vector_store %arg8[%c0_25, %c0_26], %171 {strides = array<i32>} : memref<64x32xf32, #tpu.memory_space<vmem>>, vector<64x32xf32>,
    } else {
    }
    %c0 = arith.constant 0 : index
    %c0_1 = arith.constant 0 : index
    %c0_2 = arith.constant 0 : index
    %3 = vector.load %arg3[%c0, %c0_1, %c0_2] : memref<1x4x16xf32, #tpu.memory_space<vmem>>, vector<1x4x16xf32>
    %4 = vector.shape_cast %3 : vector<1x4x16xf32> to vector<4x16xf32>
    %5 = math.cos %4 : vector<4x16xf32>
    %6 = math.sin %4 : vector<4x16xf32>
    %cst = arith.constant 1.000000e+00 : f32
    %7 = vector.broadcast %cst : f32 to vector<4x16xf32>
    %cst_3 = arith.constant 0.000000e+00 : f32
    %8 = vector.broadcast %cst_3 : f32 to vector<4x16xf32>
    %9 = arith.mulf %7, %5 : vector<4x16xf32>
    %10 = arith.mulf %8, %6 : vector<4x16xf32>
    %11 = arith.subf %9, %10 : vector<4x16xf32>
    %12 = arith.mulf %8, %5 : vector<4x16xf32>
    %13 = arith.mulf %7, %6 : vector<4x16xf32>
    %14 = arith.addf %12, %13 : vector<4x16xf32>
    %15 = arith.mulf %11, %5 : vector<4x16xf32>
    %16 = arith.mulf %14, %6 : vector<4x16xf32>
    %17 = arith.subf %15, %16 : vector<4x16xf32>
    %18 = arith.mulf %14, %5 : vector<4x16xf32>
    %19 = arith.mulf %11, %6 : vector<4x16xf32>
    %20 = arith.addf %18, %19 : vector<4x16xf32>
    %21 = arith.mulf %17, %5 : vector<4x16xf32>
    %22 = arith.mulf %20, %6 : vector<4x16xf32>
    %23 = arith.subf %21, %22 : vector<4x16xf32>
    %24 = arith.mulf %20, %5 : vector<4x16xf32>
    %25 = arith.mulf %17, %6 : vector<4x16xf32>
    %26 = arith.addf %24, %25 : vector<4x16xf32>
    %27 = arith.mulf %23, %5 : vector<4x16xf32>
    %28 = arith.mulf %26, %6 : vector<4x16xf32>
    %29 = arith.subf %27, %28 : vector<4x16xf32>
    %30 = arith.mulf %26, %5 : vector<4x16xf32>
    %31 = arith.mulf %23, %6 : vector<4x16xf32>
    %32 = arith.addf %30, %31 : vector<4x16xf32>
    %33 = arith.mulf %29, %5 : vector<4x16xf32>
    %34 = arith.mulf %32, %6 : vector<4x16xf32>
    %35 = arith.subf %33, %34 : vector<4x16xf32>
    %36 = arith.mulf %32, %5 : vector<4x16xf32>
    %37 = arith.mulf %29, %6 : vector<4x16xf32>
    %38 = arith.addf %36, %37 : vector<4x16xf32>
    %39 = arith.mulf %35, %5 : vector<4x16xf32>
    %40 = arith.mulf %38, %6 : vector<4x16xf32>
    %41 = arith.subf %39, %40 : vector<4x16xf32>
    %42 = arith.mulf %38, %5 : vector<4x16xf32>
    %43 = arith.mulf %35, %6 : vector<4x16xf32>
    %44 = arith.addf %42, %43 : vector<4x16xf32>
    %45 = arith.mulf %41, %5 : vector<4x16xf32>
    %46 = arith.mulf %44, %6 : vector<4x16xf32>
    %47 = arith.subf %45, %46 : vector<4x16xf32>
    %48 = arith.mulf %44, %5 : vector<4x16xf32>
    %49 = arith.mulf %41, %6 : vector<4x16xf32>
    %50 = arith.addf %48, %49 : vector<4x16xf32>
    %51 = vector.shape_cast %7 : vector<4x16xf32> to vector<4x1x16xf32>
    %52 = vector.shape_cast %11 : vector<4x16xf32> to vector<4x1x16xf32>
    %53 = vector.shape_cast %17 : vector<4x16xf32> to vector<4x1x16xf32>
    %54 = vector.shape_cast %23 : vector<4x16xf32> to vector<4x1x16xf32>
    %55 = vector.shape_cast %29 : vector<4x16xf32> to vector<4x1x16xf32>
    %56 = vector.shape_cast %35 : vector<4x16xf32> to vector<4x1x16xf32>
    %57 = vector.shape_cast %41 : vector<4x16xf32> to vector<4x1x16xf32>
    %58 = vector.shape_cast %47 : vector<4x16xf32> to vector<4x1x16xf32>
    %59 = vector.shape_cast %8 : vector<4x16xf32> to vector<4x1x16xf32>
    %60 = vector.shape_cast %14 : vector<4x16xf32> to vector<4x1x16xf32>
    %61 = vector.shape_cast %20 : vector<4x16xf32> to vector<4x1x16xf32>
    %62 = vector.shape_cast %26 : vector<4x16xf32> to vector<4x1x16xf32>
    %63 = vector.shape_cast %32 : vector<4x16xf32> to vector<4x1x16xf32>
    %64 = vector.shape_cast %38 : vector<4x16xf32> to vector<4x1x16xf32>
    %65 = vector.shape_cast %44 : vector<4x16xf32> to vector<4x1x16xf32>
    %66 = vector.shape_cast %50 : vector<4x16xf32> to vector<4x1x16xf32>
    %67 = tpu.concatenate %51, %52, %53, %54, %55, %56, %57, %58, %59, %60, %61, %62, %63, %64, %65, %66 in 1 : vector<4x1x16xf32>, vector<4x1x16xf32>, vector<4x1x16xf32>, vector<4x1x16xf32>, vector<4x1x16xf32>, vector<4x1x16xf32>, vector<4x1x16xf32>, vector<4x1x16xf32>, vector<4x1x16xf32>, vector<4x1x16xf32>, vector<4x1x16xf32>, vector<4x1x16xf32>, vector<4x1x16xf32>, vector<4x1x16xf32>, vector<4x1x16xf32>, vector<4x1x16xf32> -> vector<4x16x16xf32>
    %68 = vector.shape_cast %67 : vector<4x16x16xf32> to vector<64x16xf32>
    %c0_4 = arith.constant 0 : index
    %c0_5 = arith.constant 0 : index
    %69 = vector.load %arg8[%c0_4, %c0_5] : memref<64x32xf32, #tpu.memory_space<vmem>>, vector<64x32xf32>
    %cst_6 = arith.constant dense<0.000000e+00> : vector<16x32xf32>
    %70 = tpu.matmul %68, %69, %cst_6 {dimension_numbers = #tpu.dot_dimension_numbers<[0], [0], [1], [1], [0, 1, 1, 1], [], []>} : vector<64x16xf32>, vector<64x32xf32>, vector<16x32xf32> -> vector<16x32xf32>
    %c0_7 = arith.constant 0 : index
    %c0_8 = arith.constant 0 : index
    %c0_9 = arith.constant 0 : index
    %71 = vector.load %arg7[%c0_7, %c0_8, %c0_9] : memref<1x16x32xf32, #tpu.memory_space<vmem>>, vector<1x16x32xf32>
    %72 = vector.shape_cast %71 : vector<1x16x32xf32> to vector<16x32xf32>
    %73 = vector.shape_cast %70 : vector<16x32xf32> to vector<1x16x32xf32>
    tpu.vector_store %arg7[%c0_7, %c0_8, %c0_9], %73 {strides = array<i32>} : memref<1x16x32xf32, #tpu.memory_space<vmem>>, vector<1x16x32xf32>,
    return
  }
  func.func @transform_0(%arg0: i32, %arg1: i32) -> (i32, i32, i32) {
    %c0_i32 = arith.constant 0 : i32
    %c0_i32_0 = arith.constant 0 : i32
    %c0_i32_1 = arith.constant 0 : i32
    return %arg0, %c0_i32, %c0_i32_0 : i32, i32, i32
  }
  func.func @transform_1(%arg0: i32, %arg1: i32) -> (i32, i32, i32) {
    %c0_i32 = arith.constant 0 : i32
    %c0_i32_0 = arith.constant 0 : i32
    return %arg0, %c0_i32, %arg1 : i32, i32, i32
  }
  func.func @transform_2(%arg0: i32, %arg1: i32) -> (i32, i32, i32) {
    %c0_i32 = arith.constant 0 : i32
    %c0_i32_0 = arith.constant 0 : i32
    %c0_i32_1 = arith.constant 0 : i32
    return %arg0, %c0_i32, %c0_i32_0 : i32, i32, i32
  }
  func.func @transform_3(%arg0: i32, %arg1: i32) -> (i32, i32, i32, i32) {
    %c0_i32 = arith.constant 0 : i32
    %c0_i32_0 = arith.constant 0 : i32
    %c0_i32_1 = arith.constant 0 : i32
    %c0_i32_2 = arith.constant 0 : i32
    return %arg0, %c0_i32, %c0_i32_0, %c0_i32_1 : i32, i32, i32, i32
  }
  func.func @transform_4(%arg0: i32, %arg1: i32) -> (i32, i32) {
    %c0_i32 = arith.constant 0 : i32
    %c0_i32_0 = arith.constant 0 : i32
    %c0_i32_1 = arith.constant 0 : i32
    return %c0_i32, %c0_i32_0 : i32, i32
  }
  func.func @transform_5(%arg0: i32, %arg1: i32) -> (i32, i32, i32) {
    %c0_i32 = arith.constant 0 : i32
    %c0_i32_0 = arith.constant 0 : i32
    return %arg0, %arg1, %c0_i32 : i32, i32, i32
  }
}

</mosaic_0001>

<llo_original>
// kernel: nfk_attention_pallas.1
$region0: #{nfk_attention_pallas.1}
  #allocation0 [shape = 'u32[]', space=smem, size = 0x4, offset = 0x4, fixed_abs, tag = 'smem constant byte address 0x4 - core index']
  #allocation1 [shape = 'u32[144,128]{1,0:T(1,128)}', space=vmem, size = 0x12000, scoped, tag = 'internal scratch']
  #allocation2 [shape = 'f32[64,32]{1,0:T(8,128)}', space=vmem, size = 0x8000, scoped, tag = 'scratch operand']
  %s0 = inlined_call_operand.vmem [shape: f32[2,4,16], index: 0, kind: input, shape index: {}]
  %s1 = inlined_call_operand.vmem [shape: f32[2,4,16], index: 1, kind: input, shape index: {}]
  %s2 = inlined_call_operand.vmem [shape: f32[2,16,32], index: 2, kind: input, shape index: {}]
  %s3 = inlined_call_operand.vmem [shape: f32[2,2,4,8], index: 3, kind: input, shape index: {}]
  %s4 = inlined_call_operand.vmem [shape: f32[4,32], index: 4, kind: input, shape index: {}]
  %s5 = inlined_call_operand.hbm [shape: f32[2,16,32], index: 5, kind: output, shape index: {}]
  %s6 = sld [smem:[#allocation0]]
  $region57: #{nfk_attention_pallas.1} parent=0
    _
  %s8 = ssub.s32 1, %s6
  %s9 = scalar_select 0, %s8, %s6
  $region1: #{nfk_attention_pallas.1} parent=0
    #allocation3 [shape = 'u8[16384]{0}', space=vmem, size = 0x4000, scoped, tag = 'output window, operand 0']
    #allocation4 [shape = 's32[2]{0}', space=sflag, size = 0x8, scoped, tag = 'scoped memory for nfk_attention_pallas.1']
    %10 = vsyncpa [#allocation4], 0
    %s11 = scalar_lea.sflag [#allocation4], 1
    %12 = vsyncpa %s11, 0
    loop: start=0, step=1, limit=4
    $region2: #{nfk_attention_pallas.1} parent=1 // loop_pre_header
      _
    $region3: #{nfk_attention_pallas.1} parent=1 // loop_header
      %s14 = sphi 0, %s18
      %p15 = scmp.ge.s32.totalorder %s14, 4
      %s21 = sphi 0, %s33
      %s22 = sphi 0, %s29
      %s23 = sphi 0, %s21
      %s24 = sphi 0, %s22
      %s25 = sphi 0, %s23
      %s26 = sphi 0, %s24
      %s36 = sphi 0, %s38
      %s39 = sphi 0, %s36
      %s40 = sphi 0, %s39
      %s56 = sphi 0, %s40
      %s64 = sphi 0, %s66
      %s67 = sphi 0, %s64
      %s68 = sphi 0, %s67
      %s84 = sphi 0, %s68
      %s90 = sphi 0, %s92
      %s93 = sphi 0, %s90
      %s94 = sphi 0, %s93
      %s110 = sphi 0, %s94
      %s116 = sphi 0, %s118
      %s119 = sphi 0, %s116
      %s120 = sphi 0, %s119
      %s136 = sphi 0, %s120
      %s140 = sphi 0, %s140
      %s142 = sphi 0, %s140
      %s143 = sphi 0, %s142
      %s157 = sphi 0, %s143
      %s165 = sphi 0, %s167
      %s168 = sphi 0, %s165
      %s169 = sphi 0, %s168
      %s185 = sphi 0, %s169
    $region4: #{nfk_attention_pallas.1} parent=1 // loop_header_branch
      %17 = sbr.rel (%p15) target = $region8
    $region5: #{nfk_attention_pallas.1} parent=1 // loop_body
      %s19 = ssub.s32 %s14, 1
      %s20 = ssub.s32 %s14, 2
      %s27 = sadd.s32 1, %s22
      %p28 = scmp.ge.s32.totalorder %s27, 1
      %s29 = scalar_select %p28, 0, %s27
      %s30 = sadd.s32 1, %s21
      %s31 = scalar_select %p28, %s30, %s21
      %p32 = scmp.ge.s32.totalorder %s31, 2
      %s33 = scalar_select %p32, 0, %s31
      %s34 = ssub.s32 %s21, %s33
      %p35 = scmp.eq.s32.totalorder %s34, 0
      %s37 = sadd.s32 %s36, 1
      %s38 = scalar_select %p35, %s36, %s37
      %p41 = pneg %p35
      %p42 = scmp.eq.s32.totalorder %s14, 1
      %p43 = por %p41, %p42
      %p44 = scmp.ne.s32.totalorder %s36, %s39
      %p45 = scmp.eq.s32.totalorder %s14, 0
      %p46 = por %p44, %p45
      %p47 = scmp.ne.s32.totalorder %s36, %s39
      %p48 = scmp.eq.s32.totalorder %s19, 1
      %p49 = por %p47, %p48
      %p50 = scmp.ne.s32.totalorder %s39, %s40
      %p51 = scmp.eq.s32.totalorder %s19, 0
      %p52 = por %p50, %p51
      %p53 = scmp.ne.s32.totalorder %s39, %s40
      %p54 = scmp.eq.s32.totalorder %s20, 1
      %p55 = por %p53, %p54
      %p57 = scmp.ne.s32.totalorder %s40, %s56
      %p58 = scmp.eq.s32.totalorder %s20, 0
      %p59 = por %p57, %p58
      %s60 = ssub.s32 %s21, %s33
      %s61 = ssub.s32 %s22, %s29
      %s62 = sor.u32 %s60, %s61
      %p63 = scmp.eq.s32.totalorder %s62, 0
      %s65 = sadd.s32 %s64, 1
      %s66 = scalar_select %p63, %s64, %s65
      %p69 = pneg %p63
      %p70 = scmp.eq.s32.totalorder %s14, 1
      %p71 = por %p69, %p70
      %p72 = scmp.ne.s32.totalorder %s64, %s67
      %p73 = scmp.eq.s32.totalorder %s14, 0
      %p74 = por %p72, %p73
      %p75 = scmp.ne.s32.totalorder %s64, %s67
      %p76 = scmp.eq.s32.totalorder %s19, 1
      %p77 = por %p75, %p76
      %p78 = scmp.ne.s32.totalorder %s67, %s68
      %p79 = scmp.eq.s32.totalorder %s19, 0
      %p80 = por %p78, %p79
      %p81 = scmp.ne.s32.totalorder %s67, %s68
      %p82 = scmp.eq.s32.totalorder %s20, 1
      %p83 = por %p81, %p82
      %p85 = scmp.ne.s32.totalorder %s68, %s84
      %p86 = scmp.eq.s32.totalorder %s20, 0
      %p87 = por %p85, %p86
      %s88 = ssub.s32 %s21, %s33
      %p89 = scmp.eq.s32.totalorder %s88, 0
      %s91 = sadd.s32 %s90, 1
      %s92 = scalar_select %p89, %s90, %s91
      %p95 = pneg %p89
      %p96 = scmp.eq.s32.totalorder %s14, 1
      %p97 = por %p95, %p96
      %p98 = scmp.ne.s32.totalorder %s90, %s93
      %p99 = scmp.eq.s32.totalorder %s14, 0
      %p100 = por %p98, %p99
      %p101 = scmp.ne.s32.totalorder %s90, %s93
      %p102 = scmp.eq.s32.totalorder %s19, 1
      %p103 = por %p101, %p102
      %p104 = scmp.ne.s32.totalorder %s93, %s94
      %p105 = scmp.eq.s32.totalorder %s19, 0
      %p106 = por %p104, %p105
      %p107 = scmp.ne.s32.totalorder %s93, %s94
      %p108 = scmp.eq.s32.totalorder %s20, 1
      %p109 = por %p107, %p108
      %p111 = scmp.ne.s32.totalorder %s94, %s110
      %p112 = scmp.eq.s32.totalorder %s20, 0
      %p113 = por %p111, %p112
      %s114 = ssub.s32 %s21, %s33
      %p115 = scmp.eq.s32.totalorder %s114, 0
      %s117 = sadd.s32 %s116, 1
      %s118 = scalar_select %p115, %s116, %s117
      %p121 = pneg %p115
      %p122 = scmp.eq.s32.totalorder %s14, 1
      %p123 = por %p121, %p122
      %p124 = scmp.ne.s32.totalorder %s116, %s119
      %p125 = scmp.eq.s32.totalorder %s14, 0
      %p126 = por %p124, %p125
      %p127 = scmp.ne.s32.totalorder %s116, %s119
      %p128 = scmp.eq.s32.totalorder %s19, 1
      %p129 = por %p127, %p128
      %p130 = scmp.ne.s32.totalorder %s119, %s120
      %p131 = scmp.eq.s32.totalorder %s19, 0
      %p132 = por %p130, %p131
      %p133 = scmp.ne.s32.totalorder %s119, %s120
      %p134 = scmp.eq.s32.totalorder %s20, 1
      %p135 = por %p133, %p134
      %p137 = scmp.ne.s32.totalorder %s120, %s136
      %p138 = scmp.eq.s32.totalorder %s20, 0
      %p139 = por %p137, %p138
      %s141 = sadd.s32 %s140, 1
      %p144 = scmp.eq.s32.totalorder %s14, 1
      %p145 = scmp.ne.s32.totalorder %s140, %s142
      %p146 = scmp.eq.s32.totalorder %s14, 0
      %p147 = por %p145, %p146
      %p148 = scmp.ne.s32.totalorder %s140, %s142
      %p149 = scmp.eq.s32.totalorder %s19, 1
      %p150 = por %p148, %p149
      %p151 = scmp.ne.s32.totalorder %s142, %s143
      %p152 = scmp.eq.s32.totalorder %s19, 0
      %p153 = por %p151, %p152
      %p154 = scmp.ne.s32.totalorder %s142, %s143
      %p155 = scmp.eq.s32.totalorder %s20, 1
      %p156 = por %p154, %p155
      %p158 = scmp.ne.s32.totalorder %s143, %s157
      %p159 = scmp.eq.s32.totalorder %s20, 0
      %p160 = por %p158, %p159
      %s161 = ssub.s32 %s21, %s33
      %s162 = ssub.s32 %s22, %s29
      %s163 = sor.u32 %s161, %s162
      %p164 = scmp.eq.s32.totalorder %s163, 0
      %s166 = sadd.s32 %s165, 1
      %s167 = scalar_select %p164, %s165, %s166
      %p170 = pneg %p164
      %p171 = scmp.eq.s32.totalorder %s14, 1
      %p172 = por %p170, %p171
      %p173 = scmp.ne.s32.totalorder %s165, %s168
      %p174 = scmp.eq.s32.totalorder %s14, 0
      %p175 = por %p173, %p174
      %p176 = scmp.ne.s32.totalorder %s165, %s168
      %p177 = scmp.eq.s32.totalorder %s19, 1
      %p178 = por %p176, %p177
      %p179 = scmp.ne.s32.totalorder %s168, %s169
      %p180 = scmp.eq.s32.totalorder %s19, 0
      %p181 = por %p179, %p180
      %p182 = scmp.ne.s32.totalorder %s168, %s169
      %p183 = scmp.eq.s32.totalorder %s20, 1
      %p184 = por %p182, %p183
      %p186 = scmp.ne.s32.totalorder %s169, %s185
      %p187 = scmp.eq.s32.totalorder %s20, 0
      %p188 = por %p186, %p187
      %p189 = scmp.le.s32.totalorder 1, %s14
      %p190 = scmp.lt.s32.totalorder %s14, 3
      %p191 = pnand %p189, %p190
      %p192 = pneg %p191
      // Predicated region
      $region9: #{nfk_attention_pallas.1} parent=5 // pred_check
        _
      $region10: #{nfk_attention_pallas.1} parent=5 // pred_check_branch
        %194 = sbr.rel (%p191) target = $region12
      $region11: #{nfk_attention_pallas.1} parent=5 // pred_region
        %s195 = ssub.s32 %s14, 1
        // Predicated region
        $region13: #{nfk_attention_pallas.1} parent=11 // pred_check
          %p196 = pneg %p153
        $region14: #{nfk_attention_pallas.1} parent=11 // pred_check_branch
          %198 = sbr.rel (%p196) target = $region16
        $region15: #{nfk_attention_pallas.1} parent=11 // pred_region
          _
        $region16: #{nfk_attention_pallas.1} parent=11 // pred_fallthru
          _
      $region12: #{nfk_attention_pallas.1} parent=5 // pred_fallthru
        _
      %p199 = scmp.lt.s32.totalorder %s14, 2
      // Predicated region
      $region17: #{nfk_attention_pallas.1} parent=5 // pred_check
        %p200 = pneg %p199
      $region18: #{nfk_attention_pallas.1} parent=5 // pred_check_branch
        %202 = sbr.rel (%p200) target = $region20
      $region19: #{nfk_attention_pallas.1} parent=5 // pred_region
        // Predicated region
        $region21: #{nfk_attention_pallas.1} parent=19 // pred_check
          %p203 = pneg %p46
        $region22: #{nfk_attention_pallas.1} parent=19 // pred_check_branch
          %205 = sbr.rel (%p203) target = $region24
        $region23: #{nfk_attention_pallas.1} parent=19 // pred_region
          %p206 = scmp.lt.s32.totalorder %s21, 1
          %s207 = scalar_select %p206, %s21, 1
          %s208 = smul.addr %s207, 4
          %s209 = scalar_lea.vmem %s0, %s208
        $region24: #{nfk_attention_pallas.1} parent=19 // pred_fallthru
          _
        // Predicated region
        $region25: #{nfk_attention_pallas.1} parent=19 // pred_check
          %p210 = pneg %p74
        $region26: #{nfk_attention_pallas.1} parent=19 // pred_check_branch
          %212 = sbr.rel (%p210) target = $region28
        $region27: #{nfk_attention_pallas.1} parent=19 // pred_region
          %p213 = scmp.lt.s32.totalorder %s21, 1
          %s214 = scalar_select %p213, %s21, 1
          %p215 = scmp.lt.s32.totalorder %s22, 0
          %s216 = scalar_select %p215, %s22, 0
          %s217 = sadd.s32 %s216, %s214
          %s218 = smul.addr %s217, 4
          %s219 = scalar_lea.vmem %s1, %s218
        $region28: #{nfk_attention_pallas.1} parent=19 // pred_fallthru
          _
        // Predicated region
        $region29: #{nfk_attention_pallas.1} parent=19 // pred_check
          %p220 = pneg %p100
        $region30: #{nfk_attention_pallas.1} parent=19 // pred_check_branch
          %222 = sbr.rel (%p220) target = $region32
        $region31: #{nfk_attention_pallas.1} parent=19 // pred_region
          %p223 = scmp.lt.s32.totalorder %s21, 1
          %s224 = scalar_select %p223, %s21, 1
          %s225 = smul.addr %s224, 2
          %s226 = smul.addr %s225, 8
          %s227 = scalar_lea.vmem %s2, %s226
        $region32: #{nfk_attention_pallas.1} parent=19 // pred_fallthru
          _
        // Predicated region
        $region33: #{nfk_attention_pallas.1} parent=19 // pred_check
          %p228 = pneg %p126
        $region34: #{nfk_attention_pallas.1} parent=19 // pred_check_branch
          %230 = sbr.rel (%p228) target = $region36
        $region35: #{nfk_attention_pallas.1} parent=19 // pred_region
          %p231 = scmp.lt.s32.totalorder %s21, 1
          %s232 = scalar_select %p231, %s21, 1
          %s233 = smul.addr %s232, 2
          %s234 = smul.addr %s233, 4
          %s235 = scalar_lea.vmem %s3, %s234
        $region36: #{nfk_attention_pallas.1} parent=19 // pred_fallthru
          _
      $region20: #{nfk_attention_pallas.1} parent=5 // pred_fallthru
        _
      %p236 = scmp.le.s32.totalorder 1, %s14
      %p237 = scmp.lt.s32.totalorder %s14, 3
      %p238 = pnand %p236, %p237
      %p239 = pneg %p238
      // Predicated region
      $region37: #{nfk_attention_pallas.1} parent=5 // pred_check
        _
      $region38: #{nfk_attention_pallas.1} parent=5 // pred_check_branch
        %241 = sbr.rel (%p238) target = $region40
      $region39: #{nfk_attention_pallas.1} parent=5 // pred_region
        %s242 = ssub.s32 %s14, 1
        %p243 = scmp.lt.s32.totalorder %s23, 1
        %s244 = scalar_select %p243, %s23, 1
        %s245 = smul.addr %s244, 4
        %s246 = scalar_lea.vmem %s0, %s245
        %p247 = pneg %p52
        %p248 = pneg %p49
        %p249 = scmp.lt.s32.totalorder %s23, 1
        %s250 = scalar_select %p249, %s23, 1
        %p251 = scmp.lt.s32.totalorder %s24, 0
        %s252 = scalar_select %p251, %s24, 0
        %s253 = sadd.s32 %s252, %s250
        %s254 = smul.addr %s253, 4
        %s255 = scalar_lea.vmem %s1, %s254
        %p256 = pneg %p80
        %p257 = pneg %p77
        %p258 = scmp.lt.s32.totalorder %s23, 1
        %s259 = scalar_select %p258, %s23, 1
        %s260 = smul.addr %s259, 2
        %s261 = smul.addr %s260, 8
        %s262 = scalar_lea.vmem %s2, %s261
        %p263 = pneg %p106
        %p264 = pneg %p103
        %p265 = scmp.lt.s32.totalorder %s23, 1
        %s266 = scalar_select %p265, %s23, 1
        %s267 = smul.addr %s266, 2
        %s268 = smul.addr %s267, 4
        %s269 = scalar_lea.vmem %s3, %s268
        %p270 = pneg %p132
        %p271 = pneg %p129
        %p272 = pneg %p153
        %p273 = pneg %p150
        %p274 = pneg %p181
        %p275 = pneg %p178
        %s276 = sand.u32 %s168, 1
        %s277 = scalar_lea.sflag [#allocation4], %s276
        %s278 = sand.u32 %s168, 1
        %s279 = smul.addr %s278, 16
        %s280 = scalar_lea.vmem [#allocation3], %s279
        %p281 = scmp.lt.s32.totalorder %s23, 1
        %s282 = scalar_select %p281, %s23, 1
        %s283 = smul.addr %s282, 4
        %s284 = scalar_lea.vmem %s0, %s283
        %p285 = scmp.lt.s32.totalorder %s23, 1
        %s286 = scalar_select %p285, %s23, 1
        %p287 = scmp.lt.s32.totalorder %s24, 0
        %s288 = scalar_select %p287, %s24, 0
        %s289 = sadd.s32 %s288, %s286
        %s290 = smul.addr %s289, 4
        %s291 = scalar_lea.vmem %s1, %s290
        %p292 = scmp.lt.s32.totalorder %s23, 1
        %s293 = scalar_select %p292, %s23, 1
        %s294 = smul.addr %s293, 2
        %s295 = smul.addr %s294, 8
        %s296 = scalar_lea.vmem %s2, %s295
        %p297 = scmp.lt.s32.totalorder %s23, 1
        %s298 = scalar_select %p297, %s23, 1
        %s299 = smul.addr %s298, 2
        %s300 = smul.addr %s299, 4
        %s301 = scalar_lea.vmem %s3, %s300
        %s302 = smul.u32 2, %s24
        %p303 = scmp.eq.s32.totalorder %s24, 0
        // Predicated region
        $region41: #{nfk_attention_pallas.1} parent=39 // pred_check
          %p304 = pneg %p303
        $region42: #{nfk_attention_pallas.1} parent=39 // pred_check_branch
          %306 = sbr.rel (%p304) target = $region44
        $region43: #{nfk_attention_pallas.1} parent=39 // pred_region
          %v307 = vld [vmem:[%s284] sm:$0xf]
          %v308 = vand.u32 2147483647, %v307
          %vm309 = vcmp.le.f32.partialorder %v308, 0.7853982
          %vm310 = vcmp.lt.s32.totalorder %v307, 0
          %v311 = vand.u32 %v307, 2139095040
          %v312 = vshrl.u32 %v311, 23
          %v313 = vsub.s32 %v312, 127
          %v314 = vand.u32 2147483647, %v307
          %v315 = vand.u32 %v314, 8388607
          %v316 = vor.u32 %v315, 8388608
          %v317 = vsub.s32 0, %v316
          %v318 = vadd.s32 %v313, 1
          %vm319 = vcmp.gt.s32.totalorder %v318, 0
          %v320 = vsel %vm319, %v318, 0
          %v321 = vshrl.u32 %v320, 5
          %v322 = vand.u32 %v320, 31
          %v323 = vsub.s32 32, %v322
          %v324 = vshrl.u32 683565275, %v323
          %v325 = vshll.u32 683565275, %v322
          %v326 = vshrl.u32 2475754826, %v323
          %v327 = vor.u32 %v325, %v326
          %v328 = vshll.u32 2475754826, %v322
          %v329 = vshrl.u32 2131351028, %v323
          %v330 = vor.u32 %v328, %v329
          %v331 = vshll.u32 2131351028, %v322
          %v332 = vshrl.u32 2102212464, %v323
          %v333 = vor.u32 %v331, %v332
          %v334 = vshll.u32 2102212464, %v322
          %v335 = vshrl.u32 920167782, %v323
          %v336 = vor.u32 %v334, %v335
          %v337 = vshll.u32 920167782, %v322
          %v338 = vshrl.u32 1326507024, %v323
          %v339 = vor.u32 %v337, %v338
          %vm340 = vcmp.lt.s32.totalorder %v321, 1
          %vm341 = vcmp.lt.s32.totalorder %v321, 2
          %vm342 = vcmp.lt.s32.totalorder %v321, 3
          %vm343 = vcmp.lt.s32.totalorder %v321, 4
          %v344 = vsel %vm340, %v324, %v327
          %v345 = vsel %vm343, %v333, 2102212464
          %v346 = vsel %vm342, %v330, %v345
          %v347 = vsel %vm341, %v344, %v346
          %v348 = vsel %vm340, %v327, %v330
          %v349 = vsel %vm343, %v336, 920167782
          %v350 = vsel %vm342, %v333, %v349
          %v351 = vsel %vm341, %v348, %v350
          %v352 = vsel %vm340, %v330, %v333
          %v353 = vsel %vm343, %v339, 1326507024
          %v354 = vsel %vm342, %v336, %v353
          %v355 = vsel %vm341, %v352, %v354
          %v356 = vshll.u32 %v316, 8
          %v357 = vmul.u32.u64.compose %v356, %v355
          %v358 = vextract.low.u32 %v357
          %v359 = vextract.high.u32 %v357
          %v360 = vmul.u32.u64.compose %v356, %v351
          %v361 = vextract.low.u32 %v360
          %v362 = vextract.high.u32 %v360
          %v363 = vmul.u32 %v356, %v347
          %v364 = vadd.s32 %v359, %v361
          %vm365 = vc.u32 %v359, %v361
          %v366 = vadd.s32 %v362, 1
          %v367 = vsel %vm365, %v366, %v362
          %v368 = vadd.s32 %v363, %v367
          %v369 = vadd.s32 %v368, 536870912
          %v370 = vshrl.u32 %v369, 30
          %v371 = vshll.u32 %v370, 30
          %v372 = vsub.s32 %v368, %v371
          %vm373 = vcmp.lt.s32.totalorder %v372, 0
          %v374 = vsub.s32 0, %v372
          %v375 = vsel %vm373, %v374, %v372
          %v376 = vclz %v375
          %v377 = vsub.s32 %v376, 2
          %vm378 = vcmp.gt.s32.totalorder 0, %v377
          %v379 = vsel %vm378, 0, %v377
          %v380 = vsub.s32 32, %v379
          %v381 = vshll.u32 %v372, %v379
          %v382 = vshrl.u32 %v364, %v380
          %v383 = vor.u32 %v381, %v382
          %v384 = vsub.s32 4294967266, %v379
          %v385 = vadd.s32 %v384, 127
          %v386 = vshll.u32 %v385, 23
          %v387 = vor.u32 4788187, %v386
          %v388 = vand.u32 2147483647, %v387
          %v390 = vcvt.s32.f32 %v383
          %v391 = vmul.f32 %v390, %v388
          %v392 = vxor.u32 %v391, 2147483648
          %v393 = vsel %vm310, %v392, %v391
          %v394 = vsub.s32 4, %v370
          %v395 = vsel %vm310, %v394, %v370
          %v396 = vsel %vm309, %v307, %v393
          %v397 = vsel %vm309, 0, %v395
          %v398 = vcosq.f32.pop %v396
          %v399 = vsinq.f32.pop %v396
          %vm400 = vweird.f32 %v307
          %v401 = vand.u32 %v397, 3
          %vm402 = vcmp.lt.s32.totalorder %v401, 2
          %vm403 = vcmp.eq.s32.totalorder %v401, 0
          %v404 = vxor.u32 %v399, 2147483648
          %v405 = vsel %vm403, %v398, %v404
          %vm406 = vcmp.eq.s32.totalorder %v401, 2
          %v407 = vxor.u32 %v398, 2147483648
          %v408 = vsel %vm406, %v407, %v399
          %v409 = vsel %vm402, %v405, %v408
          %v410 = vsel %vm400, nan, %v409
          %v411 = vand.u32 2147483647, %v307
          %vm412 = vcmp.le.f32.partialorder %v411, 0.7853982
          %vm413 = vcmp.lt.s32.totalorder %v307, 0
          %v414 = vand.u32 %v307, 2139095040
          %v415 = vshrl.u32 %v414, 23
          %v416 = vsub.s32 %v415, 127
          %v417 = vand.u32 2147483647, %v307
          %v418 = vand.u32 %v417, 8388607
          %v419 = vor.u32 %v418, 8388608
          %v420 = vsub.s32 0, %v419
          %v421 = vadd.s32 %v416, 1
          %vm422 = vcmp.gt.s32.totalorder %v421, 0
          %v423 = vsel %vm422, %v421, 0
          %v424 = vshrl.u32 %v423, 5
          %v425 = vand.u32 %v423, 31
          %v426 = vsub.s32 32, %v425
          %v427 = vshrl.u32 683565275, %v426
          %v428 = vshll.u32 683565275, %v425
          %v429 = vshrl.u32 2475754826, %v426
          %v430 = vor.u32 %v428, %v429
          %v431 = vshll.u32 2475754826, %v425
          %v432 = vshrl.u32 2131351028, %v426
          %v433 = vor.u32 %v431, %v432
          %v434 = vshll.u32 2131351028, %v425
          %v435 = vshrl.u32 2102212464, %v426
          %v436 = vor.u32 %v434, %v435
          %v437 = vshll.u32 2102212464, %v425
          %v438 = vshrl.u32 920167782, %v426
          %v439 = vor.u32 %v437, %v438
          %v440 = vshll.u32 920167782, %v425
          %v441 = vshrl.u32 1326507024, %v426
          %v442 = vor.u32 %v440, %v441
          %vm443 = vcmp.lt.s32.totalorder %v424, 1
          %vm444 = vcmp.lt.s32.totalorder %v424, 2
          %vm445 = vcmp.lt.s32.totalorder %v424, 3
          %vm446 = vcmp.lt.s32.totalorder %v424, 4
          %v447 = vsel %vm443, %v427, %v430
          %v448 = vsel %vm446, %v436, 2102212464
          %v449 = vsel %vm445, %v433, %v448
          %v450 = vsel %vm444, %v447, %v449
          %v451 = vsel %vm443, %v430, %v433
          %v452 = vsel %vm446, %v439, 920167782
          %v453 = vsel %vm445, %v436, %v452
          %v454 = vsel %vm444, %v451, %v453
          %v455 = vsel %vm443, %v433, %v436
          %v456 = vsel %vm446, %v442, 1326507024
          %v457 = vsel %vm445, %v439, %v456
          %v458 = vsel %vm444, %v455, %v457
          %v459 = vshll.u32 %v419, 8
          %v460 = vmul.u32.u64.compose %v459, %v458
          %v461 = vextract.low.u32 %v460
          %v462 = vextract.high.u32 %v460
          %v463 = vmul.u32.u64.compose %v459, %v454
          %v464 = vextract.low.u32 %v463
          %v465 = vextract.high.u32 %v463
          %v466 = vmul.u32 %v459, %v450
          %v467 = vadd.s32 %v462, %v464
          %vm468 = vc.u32 %v462, %v464
          %v469 = vadd.s32 %v465, 1
          %v470 = vsel %vm468, %v469, %v465
          %v471 = vadd.s32 %v466, %v470
          %v472 = vadd.s32 %v471, 536870912
          %v473 = vshrl.u32 %v472, 30
          %v474 = vshll.u32 %v473, 30
          %v475 = vsub.s32 %v471, %v474
          %vm476 = vcmp.lt.s32.totalorder %v475, 0
          %v477 = vsub.s32 0, %v475
          %v478 = vsel %vm476, %v477, %v475
          %v479 = vclz %v478
          %v480 = vsub.s32 %v479, 2
          %vm481 = vcmp.gt.s32.totalorder 0, %v480
          %v482 = vsel %vm481, 0, %v480
          %v483 = vsub.s32 32, %v482
          %v484 = vshll.u32 %v475, %v482
          %v485 = vshrl.u32 %v467, %v483
          %v486 = vor.u32 %v484, %v485
          %v487 = vsub.s32 4294967266, %v482
          %v488 = vadd.s32 %v487, 127
          %v489 = vshll.u32 %v488, 23
          %v490 = vor.u32 4788187, %v489
          %v491 = vand.u32 2147483647, %v490
          %v493 = vcvt.s32.f32 %v486
          %v494 = vmul.f32 %v493, %v491
          %v495 = vxor.u32 %v494, 2147483648
          %v496 = vsel %vm413, %v495, %v494
          %v497 = vsub.s32 4, %v473
          %v498 = vsel %vm413, %v497, %v473
          %v499 = vsel %vm412, %v307, %v496
          %v500 = vsel %vm412, 0, %v498
          %v501 = vcosq.f32.pop %v499
          %v502 = vsinq.f32.pop %v499
          %vm503 = vweird.f32 %v307
          %v504 = vadd.s32 %v500, 3
          %v505 = vand.u32 %v504, 3
          %vm506 = vcmp.lt.s32.totalorder %v505, 2
          %vm507 = vcmp.eq.s32.totalorder %v505, 0
          %v508 = vxor.u32 %v502, 2147483648
          %v509 = vsel %vm507, %v501, %v508
          %vm510 = vcmp.eq.s32.totalorder %v505, 2
          %v511 = vxor.u32 %v501, 2147483648
          %v512 = vsel %vm510, %v511, %v502
          %v513 = vsel %vm506, %v509, %v512
          %v514 = vsel %vm503, nan, %v513
          %v515 = vmul.f32 %v514, 0.0
          %v516 = vsub.f32 %v410, %v515
          %v517 = vmul.f32 %v410, 0.0
          %v518 = vadd.f32 %v517, %v514
          %v519 = vmul.f32 %v516, %v410
          %v520 = vmul.f32 %v518, %v514
          %v521 = vsub.f32 %v519, %v520
          %v522 = vmul.f32 %v518, %v410
          %v523 = vmul.f32 %v516, %v514
          %v524 = vadd.f32 %v522, %v523
          %v525 = vmul.f32 %v521, %v410
          %v526 = vmul.f32 %v524, %v514
          %v527 = vsub.f32 %v525, %v526
          %v528 = vmul.f32 %v524, %v410
          %v529 = vmul.f32 %v521, %v514
          %v530 = vadd.f32 %v528, %v529
          %v531 = vmul.f32 %v527, %v410
          %v532 = vmul.f32 %v530, %v514
          %v533 = vsub.f32 %v531, %v532
          %v534 = vmul.f32 %v530, %v410
          %v535 = vmul.f32 %v527, %v514
          %v536 = vadd.f32 %v534, %v535
          %v537 = vmul.f32 %v533, %v410
          %v538 = vmul.f32 %v536, %v514
          %v539 = vsub.f32 %v537, %v538
          %v540 = vmul.f32 %v536, %v410
          %v541 = vmul.f32 %v533, %v514
          %v542 = vadd.f32 %v540, %v541
          %v543 = vmul.f32 %v539, %v410
          %v544 = vmul.f32 %v542, %v514
          %v545 = vsub.f32 %v543, %v544
          %v546 = vmul.f32 %v542, %v410
          %v547 = vmul.f32 %v539, %v514
          %v548 = vadd.f32 %v546, %v547
          %v549 = vmul.f32 %v545, %v410
          %v550 = vmul.f32 %v548, %v514
          %v551 = vsub.f32 %v549, %v550
          %v552 = vmul.f32 %v548, %v410
          %v553 = vmul.f32 %v545, %v514
          %v554 = vadd.f32 %v552, %v553
          %v557 = vunpack.c.l.s4 1966171168
          %v558 = vunpack.c.0.s8 %v557
          %v559 = vlaneseq
          %v560 = vshrl.u32 %v559, 7
          %v561 = vsub.s32 %v558, %v560
          %v562 = vrot.slane %v516, %v561
          %v563 = vcombine.high %v562, %v562
          %v565 = vunpack.c.l.s4 1966171168
          %v566 = vunpack.c.0.s8 %v565
          %v567 = vlaneseq
          %v568 = vshrl.u32 %v567, 7
          %v569 = vsub.s32 %v566, %v568
          %v570 = vrot.slane %v562, %v569
          %v572 = vunpack.c.l.s4 1966171168
          %v573 = vunpack.c.0.s8 %v572
          %v574 = vlaneseq
          %v575 = vshrl.u32 %v574, 7
          %v576 = vsub.s32 %v573, %v575
          %v577 = vrot.slane %v563, %v576
          %v578 = vcombine.high %v570, %v570
          %v579 = vcombine.high %v577, %v577
          %v582 = vunpack.c.l.s4 1966171168
          %v583 = vunpack.c.0.s8 %v582
          %v584 = vlaneseq
          %v585 = vshrl.u32 %v584, 7
          %v586 = vsub.s32 %v583, %v585
          %v587 = vrot.slane %v521, %v586
          %v588 = vcombine.high %v587, %v587
          %v590 = vunpack.c.l.s4 1966171168
          %v591 = vunpack.c.0.s8 %v590
          %v592 = vlaneseq
          %v593 = vshrl.u32 %v592, 7
          %v594 = vsub.s32 %v591, %v593
          %v595 = vrot.slane %v587, %v594
          %v597 = vunpack.c.l.s4 1966171168
          %v598 = vunpack.c.0.s8 %v597
          %v599 = vlaneseq
          %v600 = vshrl.u32 %v599, 7
          %v601 = vsub.s32 %v598, %v600
          %v602 = vrot.slane %v588, %v601
          %v603 = vcombine.high %v595, %v595
          %v604 = vcombine.high %v602, %v602
          %v607 = vunpack.c.l.s4 1966171168
          %v608 = vunpack.c.0.s8 %v607
          %v609 = vlaneseq
          %v610 = vshrl.u32 %v609, 7
          %v611 = vsub.s32 %v608, %v610
          %v612 = vrot.slane %v527, %v611
          %v613 = vcombine.high %v612, %v612
          %v615 = vunpack.c.l.s4 1966171168
          %v616 = vunpack.c.0.s8 %v615
          %v617 = vlaneseq
          %v618 = vshrl.u32 %v617, 7
          %v619 = vsub.s32 %v616, %v618
          %v620 = vrot.slane %v612, %v619
          %v622 = vunpack.c.l.s4 1966171168
          %v623 = vunpack.c.0.s8 %v622
          %v624 = vlaneseq
          %v625 = vshrl.u32 %v624, 7
          %v626 = vsub.s32 %v623, %v625
          %v627 = vrot.slane %v613, %v626
          %v628 = vcombine.high %v620, %v620
          %v629 = vcombine.high %v627, %v627
          %v632 = vunpack.c.l.s4 1966171168
          %v633 = vunpack.c.0.s8 %v632
          %v634 = vlaneseq
          %v635 = vshrl.u32 %v634, 7
          %v636 = vsub.s32 %v633, %v635
          %v637 = vrot.slane %v533, %v636
          %v638 = vcombine.high %v637, %v637
          %v640 = vunpack.c.l.s4 1966171168
          %v641 = vunpack.c.0.s8 %v640
          %v642 = vlaneseq
          %v643 = vshrl.u32 %v642, 7
          %v644 = vsub.s32 %v641, %v643
          %v645 = vrot.slane %v637, %v644
          %v647 = vunpack.c.l.s4 1966171168
          %v648 = vunpack.c.0.s8 %v647
          %v649 = vlaneseq
          %v650 = vshrl.u32 %v649, 7
          %v651 = vsub.s32 %v648, %v650
          %v652 = vrot.slane %v638, %v651
          %v653 = vcombine.high %v645, %v645
          %v654 = vcombine.high %v652, %v652
          %v657 = vunpack.c.l.s4 1966171168
          %v658 = vunpack.c.0.s8 %v657
          %v659 = vlaneseq
          %v660 = vshrl.u32 %v659, 7
          %v661 = vsub.s32 %v658, %v660
          %v662 = vrot.slane %v539, %v661
          %v663 = vcombine.high %v662, %v662
          %v665 = vunpack.c.l.s4 1966171168
          %v666 = vunpack.c.0.s8 %v665
          %v667 = vlaneseq
          %v668 = vshrl.u32 %v667, 7
          %v669 = vsub.s32 %v666, %v668
          %v670 = vrot.slane %v662, %v669
          %v672 = vunpack.c.l.s4 1966171168
          %v673 = vunpack.c.0.s8 %v672
          %v674 = vlaneseq
          %v675 = vshrl.u32 %v674, 7
          %v676 = vsub.s32 %v673, %v675
          %v677 = vrot.slane %v663, %v676
          %v678 = vcombine.high %v670, %v670
          %v679 = vcombine.high %v677, %v677
          %v682 = vunpack.c.l.s4 1966171168
          %v683 = vunpack.c.0.s8 %v682
          %v684 = vlaneseq
          %v685 = vshrl.u32 %v684, 7
          %v686 = vsub.s32 %v683, %v685
          %v687 = vrot.slane %v545, %v686
          %v688 = vcombine.high %v687, %v687
          %v690 = vunpack.c.l.s4 1966171168
          %v691 = vunpack.c.0.s8 %v690
          %v692 = vlaneseq
          %v693 = vshrl.u32 %v692, 7
          %v694 = vsub.s32 %v691, %v693
          %v695 = vrot.slane %v687, %v694
          %v697 = vunpack.c.l.s4 1966171168
          %v698 = vunpack.c.0.s8 %v697
          %v699 = vlaneseq
          %v700 = vshrl.u32 %v699, 7
          %v701 = vsub.s32 %v698, %v700
          %v702 = vrot.slane %v688, %v701
          %v703 = vcombine.high %v695, %v695
          %v704 = vcombine.high %v702, %v702
          %v707 = vunpack.c.l.s4 1966171168
          %v708 = vunpack.c.0.s8 %v707
          %v709 = vlaneseq
          %v710 = vshrl.u32 %v709, 7
          %v711 = vsub.s32 %v708, %v710
          %v712 = vrot.slane %v551, %v711
          %v713 = vcombine.high %v712, %v712
          %v715 = vunpack.c.l.s4 1966171168
          %v716 = vunpack.c.0.s8 %v715
          %v717 = vlaneseq
          %v718 = vshrl.u32 %v717, 7
          %v719 = vsub.s32 %v716, %v718
          %v720 = vrot.slane %v712, %v719
          %v722 = vunpack.c.l.s4 1966171168
          %v723 = vunpack.c.0.s8 %v722
          %v724 = vlaneseq
          %v725 = vshrl.u32 %v724, 7
          %v726 = vsub.s32 %v723, %v725
          %v727 = vrot.slane %v713, %v726
          %v728 = vcombine.high %v720, %v720
          %v729 = vcombine.high %v727, %v727
          %v732 = vunpack.c.l.s4 1966171168
          %v733 = vunpack.c.0.s8 %v732
          %v734 = vlaneseq
          %v735 = vshrl.u32 %v734, 7
          %v736 = vsub.s32 %v733, %v735
          %v737 = vrot.slane %v518, %v736
          %v738 = vcombine.high %v737, %v737
          %v740 = vunpack.c.l.s4 1966171168
          %v741 = vunpack.c.0.s8 %v740
          %v742 = vlaneseq
          %v743 = vshrl.u32 %v742, 7
          %v744 = vsub.s32 %v741, %v743
          %v745 = vrot.slane %v737, %v744
          %v747 = vunpack.c.l.s4 1966171168
          %v748 = vunpack.c.0.s8 %v747
          %v749 = vlaneseq
          %v750 = vshrl.u32 %v749, 7
          %v751 = vsub.s32 %v748, %v750
          %v752 = vrot.slane %v738, %v751
          %v753 = vcombine.high %v745, %v745
          %v754 = vcombine.high %v752, %v752
          %v757 = vunpack.c.l.s4 1966171168
          %v758 = vunpack.c.0.s8 %v757
          %v759 = vlaneseq
          %v760 = vshrl.u32 %v759, 7
          %v761 = vsub.s32 %v758, %v760
          %v762 = vrot.slane %v524, %v761
          %v763 = vcombine.high %v762, %v762
          %v765 = vunpack.c.l.s4 1966171168
          %v766 = vunpack.c.0.s8 %v765
          %v767 = vlaneseq
          %v768 = vshrl.u32 %v767, 7
          %v769 = vsub.s32 %v766, %v768
          %v770 = vrot.slane %v762, %v769
          %v772 = vunpack.c.l.s4 1966171168
          %v773 = vunpack.c.0.s8 %v772
          %v774 = vlaneseq
          %v775 = vshrl.u32 %v774, 7
          %v776 = vsub.s32 %v773, %v775
          %v777 = vrot.slane %v763, %v776
          %v778 = vcombine.high %v770, %v770
          %v779 = vcombine.high %v777, %v777
          %v782 = vunpack.c.l.s4 1966171168
          %v783 = vunpack.c.0.s8 %v782
          %v784 = vlaneseq
          %v785 = vshrl.u32 %v784, 7
          %v786 = vsub.s32 %v783, %v785
          %v787 = vrot.slane %v530, %v786
          %v788 = vcombine.high %v787, %v787
          %v790 = vunpack.c.l.s4 1966171168
          %v791 = vunpack.c.0.s8 %v790
          %v792 = vlaneseq
          %v793 = vshrl.u32 %v792, 7
          %v794 = vsub.s32 %v791, %v793
          %v795 = vrot.slane %v787, %v794
          %v797 = vunpack.c.l.s4 1966171168
          %v798 = vunpack.c.0.s8 %v797
          %v799 = vlaneseq
          %v800 = vshrl.u32 %v799, 7
          %v801 = vsub.s32 %v798, %v800
          %v802 = vrot.slane %v788, %v801
          %v803 = vcombine.high %v795, %v795
          %v804 = vcombine.high %v802, %v802
          %v807 = vunpack.c.l.s4 1966171168
          %v808 = vunpack.c.0.s8 %v807
          %v809 = vlaneseq
          %v810 = vshrl.u32 %v809, 7
          %v811 = vsub.s32 %v808, %v810
          %v812 = vrot.slane %v536, %v811
          %v813 = vcombine.high %v812, %v812
          %v815 = vunpack.c.l.s4 1966171168
          %v816 = vunpack.c.0.s8 %v815
          %v817 = vlaneseq
          %v818 = vshrl.u32 %v817, 7
          %v819 = vsub.s32 %v816, %v818
          %v820 = vrot.slane %v812, %v819
          %v822 = vunpack.c.l.s4 1966171168
          %v823 = vunpack.c.0.s8 %v822
          %v824 = vlaneseq
          %v825 = vshrl.u32 %v824, 7
          %v826 = vsub.s32 %v823, %v825
          %v827 = vrot.slane %v813, %v826
          %v828 = vcombine.high %v820, %v820
          %v829 = vcombine.high %v827, %v827
          %v832 = vunpack.c.l.s4 1966171168
          %v833 = vunpack.c.0.s8 %v832
          %v834 = vlaneseq
          %v835 = vshrl.u32 %v834, 7
          %v836 = vsub.s32 %v833, %v835
          %v837 = vrot.slane %v542, %v836
          %v838 = vcombine.high %v837, %v837
          %v840 = vunpack.c.l.s4 1966171168
          %v841 = vunpack.c.0.s8 %v840
          %v842 = vlaneseq
          %v843 = vshrl.u32 %v842, 7
          %v844 = vsub.s32 %v841, %v843
          %v845 = vrot.slane %v837, %v844
          %v847 = vunpack.c.l.s4 1966171168
          %v848 = vunpack.c.0.s8 %v847
          %v849 = vlaneseq
          %v850 = vshrl.u32 %v849, 7
          %v851 = vsub.s32 %v848, %v850
          %v852 = vrot.slane %v838, %v851
          %v853 = vcombine.high %v845, %v845
          %v854 = vcombine.high %v852, %v852
          %v857 = vunpack.c.l.s4 1966171168
          %v858 = vunpack.c.0.s8 %v857
          %v859 = vlaneseq
          %v860 = vshrl.u32 %v859, 7
          %v861 = vsub.s32 %v858, %v860
          %v862 = vrot.slane %v548, %v861
          %v863 = vcombine.high %v862, %v862
          %v865 = vunpack.c.l.s4 1966171168
          %v866 = vunpack.c.0.s8 %v865
          %v867 = vlaneseq
          %v868 = vshrl.u32 %v867, 7
          %v869 = vsub.s32 %v866, %v868
          %v870 = vrot.slane %v862, %v869
          %v872 = vunpack.c.l.s4 1966171168
          %v873 = vunpack.c.0.s8 %v872
          %v874 = vlaneseq
          %v875 = vshrl.u32 %v874, 7
          %v876 = vsub.s32 %v873, %v875
          %v877 = vrot.slane %v863, %v876
          %v878 = vcombine.high %v870, %v870
          %v879 = vcombine.high %v877, %v877
          %v882 = vunpack.c.l.s4 1966171168
          %v883 = vunpack.c.0.s8 %v882
          %v884 = vlaneseq
          %v885 = vshrl.u32 %v884, 7
          %v886 = vsub.s32 %v883, %v885
          %v887 = vrot.slane %v554, %v886
          %v888 = vcombine.high %v887, %v887
          %v890 = vunpack.c.l.s4 1966171168
          %v891 = vunpack.c.0.s8 %v890
          %v892 = vlaneseq
          %v893 = vshrl.u32 %v892, 7
          %v894 = vsub.s32 %v891, %v893
          %v895 = vrot.slane %v887, %v894
          %v897 = vunpack.c.l.s4 1966171168
          %v898 = vunpack.c.0.s8 %v897
          %v899 = vlaneseq
          %v900 = vshrl.u32 %v899, 7
          %v901 = vsub.s32 %v898, %v900
          %v902 = vrot.slane %v888, %v901
          %v903 = vcombine.high %v895, %v895
          %v904 = vcombine.high %v902, %v902
          %v905 = vlaneseq
          %v906 = vshrl.u32 %v905, 7
          %v907 = vsub.s32 0, %v906
          %v908 = vrot.slane %v570, %v907
          %v909 = vlaneseq
          %v910 = vshrl.u32 %v909, 7
          %v911 = vsub.s32 0, %v910
          %v912 = vrot.slane %v577, %v911
          %v913 = vlaneseq
          %v914 = vshrl.u32 %v913, 7
          %v915 = vsub.s32 0, %v914
          %v916 = vrot.slane %v578, %v915
          %v917 = vlaneseq
          %v918 = vshrl.u32 %v917, 7
          %v919 = vsub.s32 0, %v918
          %v920 = vrot.slane %v579, %v919
          %v925 = vlaneseq
          %v926 = vshrl.u32 %v925, 7
          %v927 = vsub.s32 0, %v926
          %v928 = vrot.slane %v595, %v927
          %v929 = vlaneseq
          %v930 = vshrl.u32 %v929, 7
          %v931 = vsub.s32 0, %v930
          %v932 = vrot.slane %v602, %v931
          %v933 = vlaneseq
          %v934 = vshrl.u32 %v933, 7
          %v935 = vsub.s32 0, %v934
          %v936 = vrot.slane %v603, %v935
          %v937 = vlaneseq
          %v938 = vshrl.u32 %v937, 7
          %v939 = vsub.s32 0, %v938
          %v940 = vrot.slane %v604, %v939
          %v945 = vlaneseq
          %v946 = vshrl.u32 %v945, 7
          %v947 = vsub.s32 0, %v946
          %v948 = vrot.slane %v620, %v947
          %v949 = vlaneseq
          %v950 = vshrl.u32 %v949, 7
          %v951 = vsub.s32 0, %v950
          %v952 = vrot.slane %v627, %v951
          %v953 = vlaneseq
          %v954 = vshrl.u32 %v953, 7
          %v955 = vsub.s32 0, %v954
          %v956 = vrot.slane %v628, %v955
          %v957 = vlaneseq
          %v958 = vshrl.u32 %v957, 7
          %v959 = vsub.s32 0, %v958
          %v960 = vrot.slane %v629, %v959
          %v965 = vlaneseq
          %v966 = vshrl.u32 %v965, 7
          %v967 = vsub.s32 0, %v966
          %v968 = vrot.slane %v645, %v967
          %v969 = vlaneseq
          %v970 = vshrl.u32 %v969, 7
          %v971 = vsub.s32 0, %v970
          %v972 = vrot.slane %v652, %v971
          %v973 = vlaneseq
          %v974 = vshrl.u32 %v973, 7
          %v975 = vsub.s32 0, %v974
          %v976 = vrot.slane %v653, %v975
          %v977 = vlaneseq
          %v978 = vshrl.u32 %v977, 7
          %v979 = vsub.s32 0, %v978
          %v980 = vrot.slane %v654, %v979
          %v985 = vlaneseq
          %v986 = vshrl.u32 %v985, 7
          %v987 = vsub.s32 0, %v986
          %v988 = vrot.slane %v670, %v987
          %v989 = vlaneseq
          %v990 = vshrl.u32 %v989, 7
          %v991 = vsub.s32 0, %v990
          %v992 = vrot.slane %v677, %v991
          %v993 = vlaneseq
          %v994 = vshrl.u32 %v993, 7
          %v995 = vsub.s32 0, %v994
          %v996 = vrot.slane %v678, %v995
          %v997 = vlaneseq
          %v998 = vshrl.u32 %v997, 7
          %v999 = vsub.s32 0, %v998
          %v1000 = vrot.slane %v679, %v999
          %v1005 = vlaneseq
          %v1006 = vshrl.u32 %v1005, 7
          %v1007 = vsub.s32 0, %v1006
          %v1008 = vrot.slane %v695, %v1007
          %v1009 = vlaneseq
          %v1010 = vshrl.u32 %v1009, 7
          %v1011 = vsub.s32 0, %v1010
          %v1012 = vrot.slane %v702, %v1011
          %v1013 = vlaneseq
          %v1014 = vshrl.u32 %v1013, 7
          %v1015 = vsub.s32 0, %v1014
          %v1016 = vrot.slane %v703, %v1015
          %v1017 = vlaneseq
          %v1018 = vshrl.u32 %v1017, 7
          %v1019 = vsub.s32 0, %v1018
          %v1020 = vrot.slane %v704, %v1019
          %v1025 = vlaneseq
          %v1026 = vshrl.u32 %v1025, 7
          %v1027 = vsub.s32 0, %v1026
          %v1028 = vrot.slane %v720, %v1027
          %v1029 = vlaneseq
          %v1030 = vshrl.u32 %v1029, 7
          %v1031 = vsub.s32 0, %v1030
          %v1032 = vrot.slane %v727, %v1031
          %v1033 = vlaneseq
          %v1034 = vshrl.u32 %v1033, 7
          %v1035 = vsub.s32 0, %v1034
          %v1036 = vrot.slane %v728, %v1035
          %v1037 = vlaneseq
          %v1038 = vshrl.u32 %v1037, 7
          %v1039 = vsub.s32 0, %v1038
          %v1040 = vrot.slane %v729, %v1039
          %v1045 = vlaneseq
          %v1046 = vshrl.u32 %v1045, 7
          %v1047 = vsub.s32 0, %v1046
          %v1048 = vrot.slane %v745, %v1047
          %v1049 = vlaneseq
          %v1050 = vshrl.u32 %v1049, 7
          %v1051 = vsub.s32 0, %v1050
          %v1052 = vrot.slane %v752, %v1051
          %v1053 = vlaneseq
          %v1054 = vshrl.u32 %v1053, 7
          %v1055 = vsub.s32 0, %v1054
          %v1056 = vrot.slane %v753, %v1055
          %v1057 = vlaneseq
          %v1058 = vshrl.u32 %v1057, 7
          %v1059 = vsub.s32 0, %v1058
          %v1060 = vrot.slane %v754, %v1059
          %v1065 = vlaneseq
          %v1066 = vshrl.u32 %v1065, 7
          %v1067 = vsub.s32 0, %v1066
          %v1068 = vrot.slane %v770, %v1067
          %v1069 = vlaneseq
          %v1070 = vshrl.u32 %v1069, 7
          %v1071 = vsub.s32 0, %v1070
          %v1072 = vrot.slane %v777, %v1071
          %v1073 = vlaneseq
          %v1074 = vshrl.u32 %v1073, 7
          %v1075 = vsub.s32 0, %v1074
          %v1076 = vrot.slane %v778, %v1075
          %v1077 = vlaneseq
          %v1078 = vshrl.u32 %v1077, 7
          %v1079 = vsub.s32 0, %v1078
          %v1080 = vrot.slane %v779, %v1079
          %v1085 = vlaneseq
          %v1086 = vshrl.u32 %v1085, 7
          %v1087 = vsub.s32 0, %v1086
          %v1088 = vrot.slane %v795, %v1087
          %v1089 = vlaneseq
          %v1090 = vshrl.u32 %v1089, 7
          %v1091 = vsub.s32 0, %v1090
          %v1092 = vrot.slane %v802, %v1091
          %v1093 = vlaneseq
          %v1094 = vshrl.u32 %v1093, 7
          %v1095 = vsub.s32 0, %v1094
          %v1096 = vrot.slane %v803, %v1095
          %v1097 = vlaneseq
          %v1098 = vshrl.u32 %v1097, 7
          %v1099 = vsub.s32 0, %v1098
          %v1100 = vrot.slane %v804, %v1099
          %v1105 = vlaneseq
          %v1106 = vshrl.u32 %v1105, 7
          %v1107 = vsub.s32 0, %v1106
          %v1108 = vrot.slane %v820, %v1107
          %v1109 = vlaneseq
          %v1110 = vshrl.u32 %v1109, 7
          %v1111 = vsub.s32 0, %v1110
          %v1112 = vrot.slane %v827, %v1111
          %v1113 = vlaneseq
          %v1114 = vshrl.u32 %v1113, 7
          %v1115 = vsub.s32 0, %v1114
          %v1116 = vrot.slane %v828, %v1115
          %v1117 = vlaneseq
          %v1118 = vshrl.u32 %v1117, 7
          %v1119 = vsub.s32 0, %v1118
          %v1120 = vrot.slane %v829, %v1119
          %v1125 = vlaneseq
          %v1126 = vshrl.u32 %v1125, 7
          %v1127 = vsub.s32 0, %v1126
          %v1128 = vrot.slane %v845, %v1127
          %v1129 = vlaneseq
          %v1130 = vshrl.u32 %v1129, 7
          %v1131 = vsub.s32 0, %v1130
          %v1132 = vrot.slane %v852, %v1131
          %v1133 = vlaneseq
          %v1134 = vshrl.u32 %v1133, 7
          %v1135 = vsub.s32 0, %v1134
          %v1136 = vrot.slane %v853, %v1135
          %v1137 = vlaneseq
          %v1138 = vshrl.u32 %v1137, 7
          %v1139 = vsub.s32 0, %v1138
          %v1140 = vrot.slane %v854, %v1139
          %v1145 = vlaneseq
          %v1146 = vshrl.u32 %v1145, 7
          %v1147 = vsub.s32 0, %v1146
          %v1148 = vrot.slane %v870, %v1147
          %v1149 = vlaneseq
          %v1150 = vshrl.u32 %v1149, 7
          %v1151 = vsub.s32 0, %v1150
          %v1152 = vrot.slane %v877, %v1151
          %v1153 = vlaneseq
          %v1154 = vshrl.u32 %v1153, 7
          %v1155 = vsub.s32 0, %v1154
          %v1156 = vrot.slane %v878, %v1155
          %v1157 = vlaneseq
          %v1158 = vshrl.u32 %v1157, 7
          %v1159 = vsub.s32 0, %v1158
          %v1160 = vrot.slane %v879, %v1159
          %v1165 = vlaneseq
          %v1166 = vshrl.u32 %v1165, 7
          %v1167 = vsub.s32 0, %v1166
          %v1168 = vrot.slane %v895, %v1167
          %v1169 = vlaneseq
          %v1170 = vshrl.u32 %v1169, 7
          %v1171 = vsub.s32 0, %v1170
          %v1172 = vrot.slane %v902, %v1171
          %v1173 = vlaneseq
          %v1174 = vshrl.u32 %v1173, 7
          %v1175 = vsub.s32 0, %v1174
          %v1176 = vrot.slane %v903, %v1175
          %v1177 = vlaneseq
          %v1178 = vshrl.u32 %v1177, 7
          %v1179 = vsub.s32 0, %v1178
          %v1180 = vrot.slane %v904, %v1179
          %vm1185 = vcmask 1040384
          %v1186 = vsel %vm1185, 1.0, %v908
          %v1187 = vsel %vm1185, 1.0, %v912
          %v1188 = vsel %vm1185, 1.0, %v916
          %v1189 = vsel %vm1185, 1.0, %v920
          %vm1190 = vcmask 1041408
          %v1191 = vsel %vm1190, %v1186, %v928
          %v1192 = vsel %vm1190, %v1187, %v932
          %v1193 = vsel %vm1190, %v1188, %v936
          %v1194 = vsel %vm1190, %v1189, %v940
          %vm1195 = vcmask 1042432
          %v1196 = vsel %vm1195, %v1191, %v948
          %v1197 = vsel %vm1195, %v1192, %v952
          %v1198 = vsel %vm1195, %v1193, %v956
          %v1199 = vsel %vm1195, %v1194, %v960
          %vm1200 = vcmask 1043456
          %v1201 = vsel %vm1200, %v1196, %v968
          %v1202 = vsel %vm1200, %v1197, %v972
          %v1203 = vsel %vm1200, %v1198, %v976
          %v1204 = vsel %vm1200, %v1199, %v980
          %vm1205 = vcmask 1044480
          %v1206 = vsel %vm1205, %v1201, %v988
          %v1207 = vsel %vm1205, %v1202, %v992
          %v1208 = vsel %vm1205, %v1203, %v996
          %v1209 = vsel %vm1205, %v1204, %v1000
          %vm1210 = vcmask 1045504
          %v1211 = vsel %vm1210, %v1206, %v1008
          %v1212 = vsel %vm1210, %v1207, %v1012
          %v1213 = vsel %vm1210, %v1208, %v1016
          %v1214 = vsel %vm1210, %v1209, %v1020
          %vm1215 = vcmask 1046528
          %v1216 = vsel %vm1215, %v1211, %v1028
          %v1217 = vsel %vm1215, %v1212, %v1032
          %v1218 = vsel %vm1215, %v1213, %v1036
          %v1219 = vsel %vm1215, %v1214, %v1040
          %v1220 = vsel %vm1185, 0.0, %v1048
          %v1221 = vsel %vm1185, 0.0, %v1052
          %v1222 = vsel %vm1185, 0.0, %v1056
          %v1223 = vsel %vm1185, 0.0, %v1060
          %v1224 = vsel %vm1190, %v1220, %v1068
          %v1225 = vsel %vm1190, %v1221, %v1072
          %v1226 = vsel %vm1190, %v1222, %v1076
          %v1227 = vsel %vm1190, %v1223, %v1080
          %v1228 = vsel %vm1195, %v1224, %v1088
          %v1229 = vsel %vm1195, %v1225, %v1092
          %v1230 = vsel %vm1195, %v1226, %v1096
          %v1231 = vsel %vm1195, %v1227, %v1100
          %v1232 = vsel %vm1200, %v1228, %v1108
          %v1233 = vsel %vm1200, %v1229, %v1112
          %v1234 = vsel %vm1200, %v1230, %v1116
          %v1235 = vsel %vm1200, %v1231, %v1120
          %v1236 = vsel %vm1205, %v1232, %v1128
          %v1237 = vsel %vm1205, %v1233, %v1132
          %v1238 = vsel %vm1205, %v1234, %v1136
          %v1239 = vsel %vm1205, %v1235, %v1140
          %v1240 = vsel %vm1210, %v1236, %v1148
          %v1241 = vsel %vm1210, %v1237, %v1152
          %v1242 = vsel %vm1210, %v1238, %v1156
          %v1243 = vsel %vm1210, %v1239, %v1160
          %v1244 = vsel %vm1215, %v1240, %v1168
          %v1245 = vsel %vm1215, %v1241, %v1172
          %v1246 = vsel %vm1215, %v1242, %v1176
          %v1247 = vsel %vm1215, %v1243, %v1180
          %v1248 = vld [vmem:[%s296] sm:$0xff]
          %v1249 = vld [vmem:[%s296 + $0x8] sm:$0xff]
          %vm1250 = vcmask 130048
          %v1252 = vsel %vm1250, %v1216, 0
          %v1255 = vsel %vm1250, %v1244, 0
          %v1258 = vsel %vm1250, %v1217, 0
          %v1261 = vsel %vm1250, %v1245, 0
          %v1264 = vsel %vm1250, %v1218, 0
          %v1267 = vsel %vm1250, %v1246, 0
          %v1270 = vsel %vm1250, %v1219, 0
          %v1273 = vsel %vm1250, %v1247, 0
          %1275 = vmatprep.subr.mxu0 0.0
          %1276 = vmatpush1.msra.mxu0 %v1248
          %1277 = vmatprep.subr.mxu0 0.0
          %1278 = vmatpush1.msra.mxu0 %v1249
          %1279 = vmatprep.subr.mxu0 0.0
          %1280 = vmatpush1.msra.mxu0 0.0
          %1281 = vmatprep.subr.mxu0 0.0
          %1282 = vmatpush1.msra.mxu0 0.0
          %1283 = vmatprep.subr.mxu0 0.0
          %1284 = vmatpush1.msra.mxu0 0.0
          %1285 = vmatprep.subr.mxu0 0.0
          %1286 = vmatpush1.msra.mxu0 0.0
          %1287 = vmatprep.subr.mxu0 0.0
          %1288 = vmatpush1.msra.mxu0 0.0
          %1289 = vmatprep.subr.mxu0 0.0
          %1290 = vmatpush1.msra.mxu0 0.0
          %1291 = vmatprep.subr.mxu0 0.0
          %1292 = vmatpush1.msra.mxu0 0.0
          %1293 = vmatprep.subr.mxu0 0.0
          %1294 = vmatpush1.msra.mxu0 0.0
          %1295 = vmatprep.subr.mxu0 0.0
          %1296 = vmatpush1.msra.mxu0 0.0
          %1297 = vmatprep.subr.mxu0 0.0
          %1298 = vmatpush1.msra.mxu0 0.0
          %1299 = vmatprep.subr.mxu0 0.0
          %1300 = vmatpush1.msra.mxu0 0.0
          %1301 = vmatprep.subr.mxu0 0.0
          %1302 = vmatpush1.msra.mxu0 0.0
          %1303 = vmatprep.subr.mxu0 0.0
          %1304 = vmatpush1.msra.mxu0 0.0
          %1305 = vmatprep.subr.mxu0 0.0
          %1306 = vmatpush1.msra.mxu0 0.0
          %1307 = vmatprep.subr.mxu0 0.0
          %1308 = vmatpush1.msra.mxu0 0.0
          %1309 = vmatprep.subr.mxu0 0.0
          %1310 = vmatpush1.msra.mxu0 0.0
          %1311 = vmatprep.subr.mxu0 0.0
          %1312 = vmatpush1.msra.mxu0 0.0
          %1313 = vmatprep.subr.mxu0 0.0
          %1314 = vmatpush1.msra.mxu0 0.0
          %1315 = vmatprep.subr.mxu0 0.0
          %1316 = vmatpush1.msra.mxu0 0.0
          %1317 = vmatprep.subr.mxu0 0.0
          %1318 = vmatpush1.msra.mxu0 0.0
          %1319 = vmatprep.subr.mxu0 0.0
          %1320 = vmatpush1.msra.mxu0 0.0
          %1321 = vmatprep.subr.mxu0 0.0
          %1322 = vmatpush1.msra.mxu0 0.0
          %1323 = vmatprep.subr.mxu0 0.0
          %1324 = vmatpush1.msra.mxu0 0.0
          %1325 = vmatprep.subr.mxu0 0.0
          %1326 = vmatpush1.msra.mxu0 0.0
          %1327 = vmatprep.subr.mxu0 0.0
          %1328 = vmatpush1.msra.mxu0 0.0
          %1329 = vmatprep.subr.mxu0 0.0
          %1330 = vmatpush1.msra.mxu0 0.0
          %1331 = vmatprep.subr.mxu0 0.0
          %1332 = vmatpush1.msra.mxu0 0.0
          %1333 = vmatprep.subr.mxu0 0.0
          %1334 = vmatpush1.msra.mxu0 0.0
          %1335 = vmatprep.subr.mxu0 0.0
          %1336 = vmatpush1.msra.mxu0 0.0
          %1337 = vmatprep.subr.mxu0 0.0
          %1338 = vmatpush1.msra.mxu0 0.0
          %1339 = vmatprep.mubr.f32.mxu0 0.0
          %1340 = vmatmul.mubr.f32.gmra.mrb[0].mxu0 %v1252
          %v1341 = vpop.f32.mrb[0].mxu0
          %v1342 = vadd.f32 0.0, %v1341
          %v1343 = vpop.f32.mrb[0].mxu0
          %1344 = vmatprep.mubr.f32.mxu0 0.0
          %1345 = vmatmul.mubr.f32.gmra.mrb[0].mxu0 %v1255
          %v1346 = vpop.f32.mrb[0].mxu0
          %v1347 = vadd.f32 0.0, %v1346
          %v1348 = vpop.f32.mrb[0].mxu0
          %1349 = vmatprep.mubr.f32.mxu0 0.0
          %1350 = vmatmul.mubr.f32.gmra.mrb[0].mxu0 %v1258
          %v1351 = vpop.f32.mrb[0].mxu0
          %v1352 = vadd.f32 0.0, %v1351
          %v1353 = vpop.f32.mrb[0].mxu0
          %1354 = vmatprep.mubr.f32.mxu0 0.0
          %1355 = vmatmul.mubr.f32.gmra.mrb[0].mxu0 %v1261
          %v1356 = vpop.f32.mrb[0].mxu0
          %v1357 = vadd.f32 0.0, %v1356
          %v1358 = vpop.f32.mrb[0].mxu0
          %1359 = vmatprep.mubr.f32.mxu0 0.0
          %1360 = vmatmul.mubr.f32.gmra.mrb[0].mxu0 %v1264
          %v1361 = vpop.f32.mrb[0].mxu0
          %v1362 = vadd.f32 0.0, %v1361
          %v1363 = vpop.f32.mrb[0].mxu0
          %1364 = vmatprep.mubr.f32.mxu0 0.0
          %1365 = vmatmul.mubr.f32.gmra.mrb[0].mxu0 %v1267
          %v1366 = vpop.f32.mrb[0].mxu0
          %v1367 = vadd.f32 0.0, %v1366
          %v1368 = vpop.f32.mrb[0].mxu0
          %1369 = vmatprep.mubr.f32.mxu0 0.0
          %1370 = vmatmul.mubr.f32.gmra.mrb[0].mxu0 %v1270
          %v1371 = vpop.f32.mrb[0].mxu0
          %v1372 = vadd.f32 0.0, %v1371
          %v1373 = vpop.f32.mrb[0].mxu0
          %1374 = vmatprep.mubr.f32.mxu0 0.0
          %1375 = vmatmul.mubr.f32.gmra.mrb[0].mxu0 %v1273
          %v1376 = vpop.f32.mrb[0].mxu0
          %v1377 = vadd.f32 0.0, %v1376
          %v1378 = vpop.f32.mrb[0].mxu0
          %1379 = vdwg.mxu0
          %v1380 = vld [vmem:[%s4] sm:$0xf]
          %v1383 = vunpack.c.l.s4 1966171168
          %v1384 = vunpack.c.0.s8 %v1383
          %v1385 = vlaneseq
          %v1386 = vshrl.u32 %v1385, 7
          %v1387 = vsub.s32 %v1384, %v1386
          %v1388 = vrot.slane %v1380, %v1387
          %v1389 = vcombine.high %v1388, %v1388
          %v1391 = vunpack.c.l.s4 1966171168
          %v1392 = vunpack.c.0.s8 %v1391
          %v1393 = vlaneseq
          %v1394 = vshrl.u32 %v1393, 7
          %v1395 = vsub.s32 %v1392, %v1394
          %v1396 = vrot.slane %v1388, %v1395
          %v1398 = vunpack.c.l.s4 1966171168
          %v1399 = vunpack.c.0.s8 %v1398
          %v1400 = vlaneseq
          %v1401 = vshrl.u32 %v1400, 7
          %v1402 = vsub.s32 %v1399, %v1401
          %v1403 = vrot.slane %v1389, %v1402
          %v1404 = vcombine.high %v1396, %v1396
          %v1405 = vcombine.high %v1403, %v1403
          %v1406 = vlaneseq
          %v1407 = vshrl.u32 %v1406, 7
          %v1408 = vsub.s32 0, %v1407
          %v1409 = vrot.slane %v1396, %v1408
          %v1410 = vlaneseq
          %v1411 = vshrl.u32 %v1410, 7
          %v1412 = vsub.s32 0, %v1411
          %v1413 = vrot.slane %v1403, %v1412
          %v1414 = vlaneseq
          %v1415 = vshrl.u32 %v1414, 7
          %v1416 = vsub.s32 0, %v1415
          %v1417 = vrot.slane %v1404, %v1416
          %v1418 = vlaneseq
          %v1419 = vshrl.u32 %v1418, 7
          %v1420 = vsub.s32 0, %v1419
          %v1421 = vrot.slane %v1405, %v1420
          %v1426 = vmul.f32 %v1342, %v1409
          %v1427 = vmul.f32 %v1352, %v1413
          %v1428 = vmul.f32 %v1362, %v1417
          %v1429 = vmul.f32 %v1372, %v1421
          %v1430 = vmul.f32 %v1347, %v1409
          %v1431 = vmul.f32 %v1357, %v1413
          %v1432 = vmul.f32 %v1367, %v1417
          %v1433 = vmul.f32 %v1377, %v1421
          %v1434 = vld [vmem:[%s301] sm:$0xf]
          %v1435 = vld [vmem:[%s301 + $0x4] sm:$0xf]
          %v1436 = vlaneseq
          %v1437 = vshrl.u32 %v1436, 7
          %v1438 = vsub.s32 0, %v1437
          %v1439 = vrot.slane %v1434, %v1438
          %1441 = vbcast.lane.b32.xlu0 %v1439, 256
          %v1442 = vpop.permute.xlu0 %1441
          %v1443 = vlaneseq
          %v1444 = vshrl.u32 %v1443, 7
          %v1445 = vsub.s32 1, %v1444
          %v1446 = vrot.slane %v1434, %v1445
          %1448 = vbcast.lane.b32.xlu0 %v1446, 256
          %v1449 = vpop.permute.xlu0 %1448
          %v1450 = vlaneseq
          %v1451 = vshrl.u32 %v1450, 7
          %v1452 = vsub.s32 2, %v1451
          %v1453 = vrot.slane %v1434, %v1452
          %1455 = vbcast.lane.b32.xlu0 %v1453, 256
          %v1456 = vpop.permute.xlu0 %1455
          %v1457 = vlaneseq
          %v1458 = vshrl.u32 %v1457, 7
          %v1459 = vsub.s32 3, %v1458
          %v1460 = vrot.slane %v1434, %v1459
          %1462 = vbcast.lane.b32.xlu0 %v1460, 256
          %v1463 = vpop.permute.xlu0 %1462
          %v1464 = vlaneseq
          %v1465 = vshrl.u32 %v1464, 7
          %v1466 = vsub.s32 0, %v1465
          %v1467 = vrot.slane %v1435, %v1466
          %1469 = vbcast.lane.b32.xlu0 %v1467, 256
          %v1470 = vpop.permute.xlu0 %1469
          %v1471 = vlaneseq
          %v1472 = vshrl.u32 %v1471, 7
          %v1473 = vsub.s32 1, %v1472
          %v1474 = vrot.slane %v1435, %v1473
          %1476 = vbcast.lane.b32.xlu0 %v1474, 256
          %v1477 = vpop.permute.xlu0 %1476
          %v1478 = vlaneseq
          %v1479 = vshrl.u32 %v1478, 7
          %v1480 = vsub.s32 2, %v1479
          %v1481 = vrot.slane %v1435, %v1480
          %1483 = vbcast.lane.b32.xlu0 %v1481, 256
          %v1484 = vpop.permute.xlu0 %1483
          %v1485 = vlaneseq
          %v1486 = vshrl.u32 %v1485, 7
          %v1487 = vsub.s32 3, %v1486
          %v1488 = vrot.slane %v1435, %v1487
          %1490 = vbcast.lane.b32.xlu0 %v1488, 256
          %v1491 = vpop.permute.xlu0 %1490
          %v1492 = vmul.f32 %v1442, %v1426
          %v1493 = vmul.f32 %v1449, %v1427
          %v1494 = vmul.f32 %v1456, %v1428
          %v1495 = vmul.f32 %v1463, %v1429
          %v1496 = vmul.f32 %v1470, %v1430
          %v1497 = vmul.f32 %v1477, %v1431
          %v1498 = vmul.f32 %v1484, %v1432
          %v1499 = vmul.f32 %v1491, %v1433
          %v1500 = vsub.f32 %v1492, %v1496
          %v1501 = vsub.f32 %v1493, %v1497
          %v1502 = vsub.f32 %v1494, %v1498
          %v1503 = vsub.f32 %v1495, %v1499
          %v1504 = vmul.f32 %v1470, %v1426
          %v1505 = vmul.f32 %v1477, %v1427
          %v1506 = vmul.f32 %v1484, %v1428
          %v1507 = vmul.f32 %v1491, %v1429
          %v1508 = vmul.f32 %v1442, %v1430
          %v1509 = vmul.f32 %v1449, %v1431
          %v1510 = vmul.f32 %v1456, %v1432
          %v1511 = vmul.f32 %v1463, %v1433
          %v1512 = vadd.f32 %v1504, %v1508
          %v1513 = vadd.f32 %v1505, %v1509
          %v1514 = vadd.f32 %v1506, %v1510
          %v1515 = vadd.f32 %v1507, %v1511
          %vm1516 = vcmask 261120
          %1517 = vst.msk [vmem:[#allocation2] sm:$0xff] %vm1516, %v1500
          %1518 = vst.msk [vmem:[#allocation2 + $0x8] sm:$0xff] %vm1516, %v1512
          %1519 = vst.msk [vmem:[#allocation2 + $0x10] sm:$0xff] %vm1516, %v1501
          %1520 = vst.msk [vmem:[#allocation2 + $0x18] sm:$0xff] %vm1516, %v1513
          %1521 = vst.msk [vmem:[#allocation2 + $0x20] sm:$0xff] %vm1516, %v1502
          %1522 = vst.msk [vmem:[#allocation2 + $0x28] sm:$0xff] %vm1516, %v1514
          %1523 = vst.msk [vmem:[#allocation2 + $0x30] sm:$0xff] %vm1516, %v1503
          %1524 = vst.msk [vmem:[#allocation2 + $0x38] sm:$0xff] %vm1516, %v1515
        $region44: #{nfk_attention_pallas.1} parent=39 // pred_fallthru
          _
        %v1525 = vld [vmem:[%s291] sm:$0xf]
        %v1526 = vand.u32 2147483647, %v1525
        %vm1527 = vcmp.le.f32.partialorder %v1526, 0.7853982
        %vm1528 = vcmp.lt.s32.totalorder %v1525, 0
        %v1529 = vand.u32 %v1525, 2139095040
        %v1530 = vshrl.u32 %v1529, 23
        %v1531 = vsub.s32 %v1530, 127
        %v1532 = vand.u32 2147483647, %v1525
        %v1533 = vand.u32 %v1532, 8388607
        %v1534 = vor.u32 %v1533, 8388608
        %v1535 = vsub.s32 0, %v1534
        %v1536 = vadd.s32 %v1531, 1
        %vm1537 = vcmp.gt.s32.totalorder %v1536, 0
        %v1538 = vsel %vm1537, %v1536, 0
        %v1539 = vshrl.u32 %v1538, 5
        %v1540 = vand.u32 %v1538, 31
        %v1541 = vsub.s32 32, %v1540
        %v1542 = vshrl.u32 683565275, %v1541
        %v1543 = vshll.u32 683565275, %v1540
        %v1544 = vshrl.u32 2475754826, %v1541
        %v1545 = vor.u32 %v1543, %v1544
        %v1546 = vshll.u32 2475754826, %v1540
        %v1547 = vshrl.u32 2131351028, %v1541
        %v1548 = vor.u32 %v1546, %v1547
        %v1549 = vshll.u32 2131351028, %v1540
        %v1550 = vshrl.u32 2102212464, %v1541
        %v1551 = vor.u32 %v1549, %v1550
        %v1552 = vshll.u32 2102212464, %v1540
        %v1553 = vshrl.u32 920167782, %v1541
        %v1554 = vor.u32 %v1552, %v1553
        %v1555 = vshll.u32 920167782, %v1540
        %v1556 = vshrl.u32 1326507024, %v1541
        %v1557 = vor.u32 %v1555, %v1556
        %vm1558 = vcmp.lt.s32.totalorder %v1539, 1
        %vm1559 = vcmp.lt.s32.totalorder %v1539, 2
        %vm1560 = vcmp.lt.s32.totalorder %v1539, 3
        %vm1561 = vcmp.lt.s32.totalorder %v1539, 4
        %v1562 = vsel %vm1558, %v1542, %v1545
        %v1563 = vsel %vm1561, %v1551, 2102212464
        %v1564 = vsel %vm1560, %v1548, %v1563
        %v1565 = vsel %vm1559, %v1562, %v1564
        %v1566 = vsel %vm1558, %v1545, %v1548
        %v1567 = vsel %vm1561, %v1554, 920167782
        %v1568 = vsel %vm1560, %v1551, %v1567
        %v1569 = vsel %vm1559, %v1566, %v1568
        %v1570 = vsel %vm1558, %v1548, %v1551
        %v1571 = vsel %vm1561, %v1557, 1326507024
        %v1572 = vsel %vm1560, %v1554, %v1571
        %v1573 = vsel %vm1559, %v1570, %v1572
        %v1574 = vshll.u32 %v1534, 8
        %v1575 = vmul.u32.u64.compose %v1574, %v1573
        %v1576 = vextract.low.u32 %v1575
        %v1577 = vextract.high.u32 %v1575
        %v1578 = vmul.u32.u64.compose %v1574, %v1569
        %v1579 = vextract.low.u32 %v1578
        %v1580 = vextract.high.u32 %v1578
        %v1581 = vmul.u32 %v1574, %v1565
        %v1582 = vadd.s32 %v1577, %v1579
        %vm1583 = vc.u32 %v1577, %v1579
        %v1584 = vadd.s32 %v1580, 1
        %v1585 = vsel %vm1583, %v1584, %v1580
        %v1586 = vadd.s32 %v1581, %v1585
        %v1587 = vadd.s32 %v1586, 536870912
        %v1588 = vshrl.u32 %v1587, 30
        %v1589 = vshll.u32 %v1588, 30
        %v1590 = vsub.s32 %v1586, %v1589
        %vm1591 = vcmp.lt.s32.totalorder %v1590, 0
        %v1592 = vsub.s32 0, %v1590
        %v1593 = vsel %vm1591, %v1592, %v1590
        %v1594 = vclz %v1593
        %v1595 = vsub.s32 %v1594, 2
        %vm1596 = vcmp.gt.s32.totalorder 0, %v1595
        %v1597 = vsel %vm1596, 0, %v1595
        %v1598 = vsub.s32 32, %v1597
        %v1599 = vshll.u32 %v1590, %v1597
        %v1600 = vshrl.u32 %v1582, %v1598
        %v1601 = vor.u32 %v1599, %v1600
        %v1602 = vsub.s32 4294967266, %v1597
        %v1603 = vadd.s32 %v1602, 127
        %v1604 = vshll.u32 %v1603, 23
        %v1605 = vor.u32 4788187, %v1604
        %v1606 = vand.u32 2147483647, %v1605
        %v1608 = vcvt.s32.f32 %v1601
        %v1609 = vmul.f32 %v1608, %v1606
        %v1610 = vxor.u32 %v1609, 2147483648
        %v1611 = vsel %vm1528, %v1610, %v1609
        %v1612 = vsub.s32 4, %v1588
        %v1613 = vsel %vm1528, %v1612, %v1588
        %v1614 = vsel %vm1527, %v1525, %v1611
        %v1615 = vsel %vm1527, 0, %v1613
        %v1616 = vcosq.f32.pop %v1614
        %v1617 = vsinq.f32.pop %v1614
        %vm1618 = vweird.f32 %v1525
        %v1619 = vand.u32 %v1615, 3
        %vm1620 = vcmp.lt.s32.totalorder %v1619, 2
        %vm1621 = vcmp.eq.s32.totalorder %v1619, 0
        %v1622 = vxor.u32 %v1617, 2147483648
        %v1623 = vsel %vm1621, %v1616, %v1622
        %vm1624 = vcmp.eq.s32.totalorder %v1619, 2
        %v1625 = vxor.u32 %v1616, 2147483648
        %v1626 = vsel %vm1624, %v1625, %v1617
        %v1627 = vsel %vm1620, %v1623, %v1626
        %v1628 = vsel %vm1618, nan, %v1627
        %v1629 = vand.u32 2147483647, %v1525
        %vm1630 = vcmp.le.f32.partialorder %v1629, 0.7853982
        %vm1631 = vcmp.lt.s32.totalorder %v1525, 0
        %v1632 = vand.u32 %v1525, 2139095040
        %v1633 = vshrl.u32 %v1632, 23
        %v1634 = vsub.s32 %v1633, 127
        %v1635 = vand.u32 2147483647, %v1525
        %v1636 = vand.u32 %v1635, 8388607
        %v1637 = vor.u32 %v1636, 8388608
        %v1638 = vsub.s32 0, %v1637
        %v1639 = vadd.s32 %v1634, 1
        %vm1640 = vcmp.gt.s32.totalorder %v1639, 0
        %v1641 = vsel %vm1640, %v1639, 0
        %v1642 = vshrl.u32 %v1641, 5
        %v1643 = vand.u32 %v1641, 31
        %v1644 = vsub.s32 32, %v1643
        %v1645 = vshrl.u32 683565275, %v1644
        %v1646 = vshll.u32 683565275, %v1643
        %v1647 = vshrl.u32 2475754826, %v1644
        %v1648 = vor.u32 %v1646, %v1647
        %v1649 = vshll.u32 2475754826, %v1643
        %v1650 = vshrl.u32 2131351028, %v1644
        %v1651 = vor.u32 %v1649, %v1650
        %v1652 = vshll.u32 2131351028, %v1643
        %v1653 = vshrl.u32 2102212464, %v1644
        %v1654 = vor.u32 %v1652, %v1653
        %v1655 = vshll.u32 2102212464, %v1643
        %v1656 = vshrl.u32 920167782, %v1644
        %v1657 = vor.u32 %v1655, %v1656
        %v1658 = vshll.u32 920167782, %v1643
        %v1659 = vshrl.u32 1326507024, %v1644
        %v1660 = vor.u32 %v1658, %v1659
        %vm1661 = vcmp.lt.s32.totalorder %v1642, 1
        %vm1662 = vcmp.lt.s32.totalorder %v1642, 2
        %vm1663 = vcmp.lt.s32.totalorder %v1642, 3
        %vm1664 = vcmp.lt.s32.totalorder %v1642, 4
        %v1665 = vsel %vm1661, %v1645, %v1648
        %v1666 = vsel %vm1664, %v1654, 2102212464
        %v1667 = vsel %vm1663, %v1651, %v1666
        %v1668 = vsel %vm1662, %v1665, %v1667
        %v1669 = vsel %vm1661, %v1648, %v1651
        %v1670 = vsel %vm1664, %v1657, 920167782
        %v1671 = vsel %vm1663, %v1654, %v1670
        %v1672 = vsel %vm1662, %v1669, %v1671
        %v1673 = vsel %vm1661, %v1651, %v1654
        %v1674 = vsel %vm1664, %v1660, 1326507024
        %v1675 = vsel %vm1663, %v1657, %v1674
        %v1676 = vsel %vm1662, %v1673, %v1675
        %v1677 = vshll.u32 %v1637, 8
        %v1678 = vmul.u32.u64.compose %v1677, %v1676
        %v1679 = vextract.low.u32 %v1678
        %v1680 = vextract.high.u32 %v1678
        %v1681 = vmul.u32.u64.compose %v1677, %v1672
        %v1682 = vextract.low.u32 %v1681
        %v1683 = vextract.high.u32 %v1681
        %v1684 = vmul.u32 %v1677, %v1668
        %v1685 = vadd.s32 %v1680, %v1682
        %vm1686 = vc.u32 %v1680, %v1682
        %v1687 = vadd.s32 %v1683, 1
        %v1688 = vsel %vm1686, %v1687, %v1683
        %v1689 = vadd.s32 %v1684, %v1688
        %v1690 = vadd.s32 %v1689, 536870912
        %v1691 = vshrl.u32 %v1690, 30
        %v1692 = vshll.u32 %v1691, 30
        %v1693 = vsub.s32 %v1689, %v1692
        %vm1694 = vcmp.lt.s32.totalorder %v1693, 0
        %v1695 = vsub.s32 0, %v1693
        %v1696 = vsel %vm1694, %v1695, %v1693
        %v1697 = vclz %v1696
        %v1698 = vsub.s32 %v1697, 2
        %vm1699 = vcmp.gt.s32.totalorder 0, %v1698
        %v1700 = vsel %vm1699, 0, %v1698
        %v1701 = vsub.s32 32, %v1700
        %v1702 = vshll.u32 %v1693, %v1700
        %v1703 = vshrl.u32 %v1685, %v1701
        %v1704 = vor.u32 %v1702, %v1703
        %v1705 = vsub.s32 4294967266, %v1700
        %v1706 = vadd.s32 %v1705, 127
        %v1707 = vshll.u32 %v1706, 23
        %v1708 = vor.u32 4788187, %v1707
        %v1709 = vand.u32 2147483647, %v1708
        %v1711 = vcvt.s32.f32 %v1704
        %v1712 = vmul.f32 %v1711, %v1709
        %v1713 = vxor.u32 %v1712, 2147483648
        %v1714 = vsel %vm1631, %v1713, %v1712
        %v1715 = vsub.s32 4, %v1691
        %v1716 = vsel %vm1631, %v1715, %v1691
        %v1717 = vsel %vm1630, %v1525, %v1714
        %v1718 = vsel %vm1630, 0, %v1716
        %v1719 = vcosq.f32.pop %v1717
        %v1720 = vsinq.f32.pop %v1717
        %vm1721 = vweird.f32 %v1525
        %v1722 = vadd.s32 %v1718, 3
        %v1723 = vand.u32 %v1722, 3
        %vm1724 = vcmp.lt.s32.totalorder %v1723, 2
        %vm1725 = vcmp.eq.s32.totalorder %v1723, 0
        %v1726 = vxor.u32 %v1720, 2147483648
        %v1727 = vsel %vm1725, %v1719, %v1726
        %vm1728 = vcmp.eq.s32.totalorder %v1723, 2
        %v1729 = vxor.u32 %v1719, 2147483648
        %v1730 = vsel %vm1728, %v1729, %v1720
        %v1731 = vsel %vm1724, %v1727, %v1730
        %v1732 = vsel %vm1721, nan, %v1731
        %v1733 = vmul.f32 %v1732, 0.0
        %v1734 = vsub.f32 %v1628, %v1733
        %v1735 = vmul.f32 %v1628, 0.0
        %v1736 = vadd.f32 %v1735, %v1732
        %v1737 = vmul.f32 %v1734, %v1628
        %v1738 = vmul.f32 %v1736, %v1732
        %v1739 = vsub.f32 %v1737, %v1738
        %v1740 = vmul.f32 %v1736, %v1628
        %v1741 = vmul.f32 %v1734, %v1732
        %v1742 = vadd.f32 %v1740, %v1741
        %v1743 = vmul.f32 %v1739, %v1628
        %v1744 = vmul.f32 %v1742, %v1732
        %v1745 = vsub.f32 %v1743, %v1744
        %v1746 = vmul.f32 %v1742, %v1628
        %v1747 = vmul.f32 %v1739, %v1732
        %v1748 = vadd.f32 %v1746, %v1747
        %v1749 = vmul.f32 %v1745, %v1628
        %v1750 = vmul.f32 %v1748, %v1732
        %v1751 = vsub.f32 %v1749, %v1750
        %v1752 = vmul.f32 %v1748, %v1628
        %v1753 = vmul.f32 %v1745, %v1732
        %v1754 = vadd.f32 %v1752, %v1753
        %v1755 = vmul.f32 %v1751, %v1628
        %v1756 = vmul.f32 %v1754, %v1732
        %v1757 = vsub.f32 %v1755, %v1756
        %v1758 = vmul.f32 %v1754, %v1628
        %v1759 = vmul.f32 %v1751, %v1732
        %v1760 = vadd.f32 %v1758, %v1759
        %v1761 = vmul.f32 %v1757, %v1628
        %v1762 = vmul.f32 %v1760, %v1732
        %v1763 = vsub.f32 %v1761, %v1762
        %v1764 = vmul.f32 %v1760, %v1628
        %v1765 = vmul.f32 %v1757, %v1732
        %v1766 = vadd.f32 %v1764, %v1765
        %v1767 = vmul.f32 %v1763, %v1628
        %v1768 = vmul.f32 %v1766, %v1732
        %v1769 = vsub.f32 %v1767, %v1768
        %v1770 = vmul.f32 %v1766, %v1628
        %v1771 = vmul.f32 %v1763, %v1732
        %v1772 = vadd.f32 %v1770, %v1771
        %v1775 = vunpack.c.l.s4 1966171168
        %v1776 = vunpack.c.0.s8 %v1775
        %v1777 = vlaneseq
        %v1778 = vshrl.u32 %v1777, 7
        %v1779 = vsub.s32 %v1776, %v1778
        %v1780 = vrot.slane %v1734, %v1779
        %v1781 = vcombine.high %v1780, %v1780
        %v1783 = vunpack.c.l.s4 1966171168
        %v1784 = vunpack.c.0.s8 %v1783
        %v1785 = vlaneseq
        %v1786 = vshrl.u32 %v1785, 7
        %v1787 = vsub.s32 %v1784, %v1786
        %v1788 = vrot.slane %v1780, %v1787
        %v1790 = vunpack.c.l.s4 1966171168
        %v1791 = vunpack.c.0.s8 %v1790
        %v1792 = vlaneseq
        %v1793 = vshrl.u32 %v1792, 7
        %v1794 = vsub.s32 %v1791, %v1793
        %v1795 = vrot.slane %v1781, %v1794
        %v1796 = vcombine.high %v1788, %v1788
        %v1797 = vcombine.high %v1795, %v1795
        %v1800 = vunpack.c.l.s4 1966171168
        %v1801 = vunpack.c.0.s8 %v1800
        %v1802 = vlaneseq
        %v1803 = vshrl.u32 %v1802, 7
        %v1804 = vsub.s32 %v1801, %v1803
        %v1805 = vrot.slane %v1739, %v1804
        %v1806 = vcombine.high %v1805, %v1805
        %v1808 = vunpack.c.l.s4 1966171168
        %v1809 = vunpack.c.0.s8 %v1808
        %v1810 = vlaneseq
        %v1811 = vshrl.u32 %v1810, 7
        %v1812 = vsub.s32 %v1809, %v1811
        %v1813 = vrot.slane %v1805, %v1812
        %v1815 = vunpack.c.l.s4 1966171168
        %v1816 = vunpack.c.0.s8 %v1815
        %v1817 = vlaneseq
        %v1818 = vshrl.u32 %v1817, 7
        %v1819 = vsub.s32 %v1816, %v1818
        %v1820 = vrot.slane %v1806, %v1819
        %v1821 = vcombine.high %v1813, %v1813
        %v1822 = vcombine.high %v1820, %v1820
        %v1825 = vunpack.c.l.s4 1966171168
        %v1826 = vunpack.c.0.s8 %v1825
        %v1827 = vlaneseq
        %v1828 = vshrl.u32 %v1827, 7
        %v1829 = vsub.s32 %v1826, %v1828
        %v1830 = vrot.slane %v1745, %v1829
        %v1831 = vcombine.high %v1830, %v1830
        %v1833 = vunpack.c.l.s4 1966171168
        %v1834 = vunpack.c.0.s8 %v1833
        %v1835 = vlaneseq
        %v1836 = vshrl.u32 %v1835, 7
        %v1837 = vsub.s32 %v1834, %v1836
        %v1838 = vrot.slane %v1830, %v1837
        %v1840 = vunpack.c.l.s4 1966171168
        %v1841 = vunpack.c.0.s8 %v1840
        %v1842 = vlaneseq
        %v1843 = vshrl.u32 %v1842, 7
        %v1844 = vsub.s32 %v1841, %v1843
        %v1845 = vrot.slane %v1831, %v1844
        %v1846 = vcombine.high %v1838, %v1838
        %v1847 = vcombine.high %v1845, %v1845
        %v1850 = vunpack.c.l.s4 1966171168
        %v1851 = vunpack.c.0.s8 %v1850
        %v1852 = vlaneseq
        %v1853 = vshrl.u32 %v1852, 7
        %v1854 = vsub.s32 %v1851, %v1853
        %v1855 = vrot.slane %v1751, %v1854
        %v1856 = vcombine.high %v1855, %v1855
        %v1858 = vunpack.c.l.s4 1966171168
        %v1859 = vunpack.c.0.s8 %v1858
        %v1860 = vlaneseq
        %v1861 = vshrl.u32 %v1860, 7
        %v1862 = vsub.s32 %v1859, %v1861
        %v1863 = vrot.slane %v1855, %v1862
        %v1865 = vunpack.c.l.s4 1966171168
        %v1866 = vunpack.c.0.s8 %v1865
        %v1867 = vlaneseq
        %v1868 = vshrl.u32 %v1867, 7
        %v1869 = vsub.s32 %v1866, %v1868
        %v1870 = vrot.slane %v1856, %v1869
        %v1871 = vcombine.high %v1863, %v1863
        %v1872 = vcombine.high %v1870, %v1870
        %v1875 = vunpack.c.l.s4 1966171168
        %v1876 = vunpack.c.0.s8 %v1875
        %v1877 = vlaneseq
        %v1878 = vshrl.u32 %v1877, 7
        %v1879 = vsub.s32 %v1876, %v1878
        %v1880 = vrot.slane %v1757, %v1879
        %v1881 = vcombine.high %v1880, %v1880
        %v1883 = vunpack.c.l.s4 1966171168
        %v1884 = vunpack.c.0.s8 %v1883
        %v1885 = vlaneseq
        %v1886 = vshrl.u32 %v1885, 7
        %v1887 = vsub.s32 %v1884, %v1886
        %v1888 = vrot.slane %v1880, %v1887
        %v1890 = vunpack.c.l.s4 1966171168
        %v1891 = vunpack.c.0.s8 %v1890
        %v1892 = vlaneseq
        %v1893 = vshrl.u32 %v1892, 7
        %v1894 = vsub.s32 %v1891, %v1893
        %v1895 = vrot.slane %v1881, %v1894
        %v1896 = vcombine.high %v1888, %v1888
        %v1897 = vcombine.high %v1895, %v1895
        %v1900 = vunpack.c.l.s4 1966171168
        %v1901 = vunpack.c.0.s8 %v1900
        %v1902 = vlaneseq
        %v1903 = vshrl.u32 %v1902, 7
        %v1904 = vsub.s32 %v1901, %v1903
        %v1905 = vrot.slane %v1763, %v1904
        %v1906 = vcombine.high %v1905, %v1905
        %v1908 = vunpack.c.l.s4 1966171168
        %v1909 = vunpack.c.0.s8 %v1908
        %v1910 = vlaneseq
        %v1911 = vshrl.u32 %v1910, 7
        %v1912 = vsub.s32 %v1909, %v1911
        %v1913 = vrot.slane %v1905, %v1912
        %v1915 = vunpack.c.l.s4 1966171168
        %v1916 = vunpack.c.0.s8 %v1915
        %v1917 = vlaneseq
        %v1918 = vshrl.u32 %v1917, 7
        %v1919 = vsub.s32 %v1916, %v1918
        %v1920 = vrot.slane %v1906, %v1919
        %v1921 = vcombine.high %v1913, %v1913
        %v1922 = vcombine.high %v1920, %v1920
        %v1925 = vunpack.c.l.s4 1966171168
        %v1926 = vunpack.c.0.s8 %v1925
        %v1927 = vlaneseq
        %v1928 = vshrl.u32 %v1927, 7
        %v1929 = vsub.s32 %v1926, %v1928
        %v1930 = vrot.slane %v1769, %v1929
        %v1931 = vcombine.high %v1930, %v1930
        %v1933 = vunpack.c.l.s4 1966171168
        %v1934 = vunpack.c.0.s8 %v1933
        %v1935 = vlaneseq
        %v1936 = vshrl.u32 %v1935, 7
        %v1937 = vsub.s32 %v1934, %v1936
        %v1938 = vrot.slane %v1930, %v1937
        %v1940 = vunpack.c.l.s4 1966171168
        %v1941 = vunpack.c.0.s8 %v1940
        %v1942 = vlaneseq
        %v1943 = vshrl.u32 %v1942, 7
        %v1944 = vsub.s32 %v1941, %v1943
        %v1945 = vrot.slane %v1931, %v1944
        %v1946 = vcombine.high %v1938, %v1938
        %v1947 = vcombine.high %v1945, %v1945
        %v1950 = vunpack.c.l.s4 1966171168
        %v1951 = vunpack.c.0.s8 %v1950
        %v1952 = vlaneseq
        %v1953 = vshrl.u32 %v1952, 7
        %v1954 = vsub.s32 %v1951, %v1953
        %v1955 = vrot.slane %v1736, %v1954
        %v1956 = vcombine.high %v1955, %v1955
        %v1958 = vunpack.c.l.s4 1966171168
        %v1959 = vunpack.c.0.s8 %v1958
        %v1960 = vlaneseq
        %v1961 = vshrl.u32 %v1960, 7
        %v1962 = vsub.s32 %v1959, %v1961
        %v1963 = vrot.slane %v1955, %v1962
        %v1965 = vunpack.c.l.s4 1966171168
        %v1966 = vunpack.c.0.s8 %v1965
        %v1967 = vlaneseq
        %v1968 = vshrl.u32 %v1967, 7
        %v1969 = vsub.s32 %v1966, %v1968
        %v1970 = vrot.slane %v1956, %v1969
        %v1971 = vcombine.high %v1963, %v1963
        %v1972 = vcombine.high %v1970, %v1970
        %v1975 = vunpack.c.l.s4 1966171168
        %v1976 = vunpack.c.0.s8 %v1975
        %v1977 = vlaneseq
        %v1978 = vshrl.u32 %v1977, 7
        %v1979 = vsub.s32 %v1976, %v1978
        %v1980 = vrot.slane %v1742, %v1979
        %v1981 = vcombine.high %v1980, %v1980
        %v1983 = vunpack.c.l.s4 1966171168
        %v1984 = vunpack.c.0.s8 %v1983
        %v1985 = vlaneseq
        %v1986 = vshrl.u32 %v1985, 7
        %v1987 = vsub.s32 %v1984, %v1986
        %v1988 = vrot.slane %v1980, %v1987
        %v1990 = vunpack.c.l.s4 1966171168
        %v1991 = vunpack.c.0.s8 %v1990
        %v1992 = vlaneseq
        %v1993 = vshrl.u32 %v1992, 7
        %v1994 = vsub.s32 %v1991, %v1993
        %v1995 = vrot.slane %v1981, %v1994
        %v1996 = vcombine.high %v1988, %v1988
        %v1997 = vcombine.high %v1995, %v1995
        %v2000 = vunpack.c.l.s4 1966171168
        %v2001 = vunpack.c.0.s8 %v2000
        %v2002 = vlaneseq
        %v2003 = vshrl.u32 %v2002, 7
        %v2004 = vsub.s32 %v2001, %v2003
        %v2005 = vrot.slane %v1748, %v2004
        %v2006 = vcombine.high %v2005, %v2005
        %v2008 = vunpack.c.l.s4 1966171168
        %v2009 = vunpack.c.0.s8 %v2008
        %v2010 = vlaneseq
        %v2011 = vshrl.u32 %v2010, 7
        %v2012 = vsub.s32 %v2009, %v2011
        %v2013 = vrot.slane %v2005, %v2012
        %v2015 = vunpack.c.l.s4 1966171168
        %v2016 = vunpack.c.0.s8 %v2015
        %v2017 = vlaneseq
        %v2018 = vshrl.u32 %v2017, 7
        %v2019 = vsub.s32 %v2016, %v2018
        %v2020 = vrot.slane %v2006, %v2019
        %v2021 = vcombine.high %v2013, %v2013
        %v2022 = vcombine.high %v2020, %v2020
        %v2025 = vunpack.c.l.s4 1966171168
        %v2026 = vunpack.c.0.s8 %v2025
        %v2027 = vlaneseq
        %v2028 = vshrl.u32 %v2027, 7
        %v2029 = vsub.s32 %v2026, %v2028
        %v2030 = vrot.slane %v1754, %v2029
        %v2031 = vcombine.high %v2030, %v2030
        %v2033 = vunpack.c.l.s4 1966171168
        %v2034 = vunpack.c.0.s8 %v2033
        %v2035 = vlaneseq
        %v2036 = vshrl.u32 %v2035, 7
        %v2037 = vsub.s32 %v2034, %v2036
        %v2038 = vrot.slane %v2030, %v2037
        %v2040 = vunpack.c.l.s4 1966171168
        %v2041 = vunpack.c.0.s8 %v2040
        %v2042 = vlaneseq
        %v2043 = vshrl.u32 %v2042, 7
        %v2044 = vsub.s32 %v2041, %v2043
        %v2045 = vrot.slane %v2031, %v2044
        %v2046 = vcombine.high %v2038, %v2038
        %v2047 = vcombine.high %v2045, %v2045
        %v2050 = vunpack.c.l.s4 1966171168
        %v2051 = vunpack.c.0.s8 %v2050
        %v2052 = vlaneseq
        %v2053 = vshrl.u32 %v2052, 7
        %v2054 = vsub.s32 %v2051, %v2053
        %v2055 = vrot.slane %v1760, %v2054
        %v2056 = vcombine.high %v2055, %v2055
        %v2058 = vunpack.c.l.s4 1966171168
        %v2059 = vunpack.c.0.s8 %v2058
        %v2060 = vlaneseq
        %v2061 = vshrl.u32 %v2060, 7
        %v2062 = vsub.s32 %v2059, %v2061
        %v2063 = vrot.slane %v2055, %v2062
        %v2065 = vunpack.c.l.s4 1966171168
        %v2066 = vunpack.c.0.s8 %v2065
        %v2067 = vlaneseq
        %v2068 = vshrl.u32 %v2067, 7
        %v2069 = vsub.s32 %v2066, %v2068
        %v2070 = vrot.slane %v2056, %v2069
        %v2071 = vcombine.high %v2063, %v2063
        %v2072 = vcombine.high %v2070, %v2070
        %v2075 = vunpack.c.l.s4 1966171168
        %v2076 = vunpack.c.0.s8 %v2075
        %v2077 = vlaneseq
        %v2078 = vshrl.u32 %v2077, 7
        %v2079 = vsub.s32 %v2076, %v2078
        %v2080 = vrot.slane %v1766, %v2079
        %v2081 = vcombine.high %v2080, %v2080
        %v2083 = vunpack.c.l.s4 1966171168
        %v2084 = vunpack.c.0.s8 %v2083
        %v2085 = vlaneseq
        %v2086 = vshrl.u32 %v2085, 7
        %v2087 = vsub.s32 %v2084, %v2086
        %v2088 = vrot.slane %v2080, %v2087
        %v2090 = vunpack.c.l.s4 1966171168
        %v2091 = vunpack.c.0.s8 %v2090
        %v2092 = vlaneseq
        %v2093 = vshrl.u32 %v2092, 7
        %v2094 = vsub.s32 %v2091, %v2093
        %v2095 = vrot.slane %v2081, %v2094
        %v2096 = vcombine.high %v2088, %v2088
        %v2097 = vcombine.high %v2095, %v2095
        %v2100 = vunpack.c.l.s4 1966171168
        %v2101 = vunpack.c.0.s8 %v2100
        %v2102 = vlaneseq
        %v2103 = vshrl.u32 %v2102, 7
        %v2104 = vsub.s32 %v2101, %v2103
        %v2105 = vrot.slane %v1772, %v2104
        %v2106 = vcombine.high %v2105, %v2105
        %v2108 = vunpack.c.l.s4 1966171168
        %v2109 = vunpack.c.0.s8 %v2108
        %v2110 = vlaneseq
        %v2111 = vshrl.u32 %v2110, 7
        %v2112 = vsub.s32 %v2109, %v2111
        %v2113 = vrot.slane %v2105, %v2112
        %v2115 = vunpack.c.l.s4 1966171168
        %v2116 = vunpack.c.0.s8 %v2115
        %v2117 = vlaneseq
        %v2118 = vshrl.u32 %v2117, 7
        %v2119 = vsub.s32 %v2116, %v2118
        %v2120 = vrot.slane %v2106, %v2119
        %v2121 = vcombine.high %v2113, %v2113
        %v2122 = vcombine.high %v2120, %v2120
        %v2123 = vlaneseq
        %v2124 = vshrl.u32 %v2123, 7
        %v2125 = vsub.s32 0, %v2124
        %v2126 = vrot.slane %v1788, %v2125
        %v2127 = vlaneseq
        %v2128 = vshrl.u32 %v2127, 7
        %v2129 = vsub.s32 0, %v2128
        %v2130 = vrot.slane %v1795, %v2129
        %v2131 = vlaneseq
        %v2132 = vshrl.u32 %v2131, 7
        %v2133 = vsub.s32 0, %v2132
        %v2134 = vrot.slane %v1796, %v2133
        %v2135 = vlaneseq
        %v2136 = vshrl.u32 %v2135, 7
        %v2137 = vsub.s32 0, %v2136
        %v2138 = vrot.slane %v1797, %v2137
        %v2143 = vlaneseq
        %v2144 = vshrl.u32 %v2143, 7
        %v2145 = vsub.s32 0, %v2144
        %v2146 = vrot.slane %v1813, %v2145
        %v2147 = vlaneseq
        %v2148 = vshrl.u32 %v2147, 7
        %v2149 = vsub.s32 0, %v2148
        %v2150 = vrot.slane %v1820, %v2149
        %v2151 = vlaneseq
        %v2152 = vshrl.u32 %v2151, 7
        %v2153 = vsub.s32 0, %v2152
        %v2154 = vrot.slane %v1821, %v2153
        %v2155 = vlaneseq
        %v2156 = vshrl.u32 %v2155, 7
        %v2157 = vsub.s32 0, %v2156
        %v2158 = vrot.slane %v1822, %v2157
        %v2163 = vlaneseq
        %v2164 = vshrl.u32 %v2163, 7
        %v2165 = vsub.s32 0, %v2164
        %v2166 = vrot.slane %v1838, %v2165
        %v2167 = vlaneseq
        %v2168 = vshrl.u32 %v2167, 7
        %v2169 = vsub.s32 0, %v2168
        %v2170 = vrot.slane %v1845, %v2169
        %v2171 = vlaneseq
        %v2172 = vshrl.u32 %v2171, 7
        %v2173 = vsub.s32 0, %v2172
        %v2174 = vrot.slane %v1846, %v2173
        %v2175 = vlaneseq
        %v2176 = vshrl.u32 %v2175, 7
        %v2177 = vsub.s32 0, %v2176
        %v2178 = vrot.slane %v1847, %v2177
        %v2183 = vlaneseq
        %v2184 = vshrl.u32 %v2183, 7
        %v2185 = vsub.s32 0, %v2184
        %v2186 = vrot.slane %v1863, %v2185
        %v2187 = vlaneseq
        %v2188 = vshrl.u32 %v2187, 7
        %v2189 = vsub.s32 0, %v2188
        %v2190 = vrot.slane %v1870, %v2189
        %v2191 = vlaneseq
        %v2192 = vshrl.u32 %v2191, 7
        %v2193 = vsub.s32 0, %v2192
        %v2194 = vrot.slane %v1871, %v2193
        %v2195 = vlaneseq
        %v2196 = vshrl.u32 %v2195, 7
        %v2197 = vsub.s32 0, %v2196
        %v2198 = vrot.slane %v1872, %v2197
        %v2203 = vlaneseq
        %v2204 = vshrl.u32 %v2203, 7
        %v2205 = vsub.s32 0, %v2204
        %v2206 = vrot.slane %v1888, %v2205
        %v2207 = vlaneseq
        %v2208 = vshrl.u32 %v2207, 7
        %v2209 = vsub.s32 0, %v2208
        %v2210 = vrot.slane %v1895, %v2209
        %v2211 = vlaneseq
        %v2212 = vshrl.u32 %v2211, 7
        %v2213 = vsub.s32 0, %v2212
        %v2214 = vrot.slane %v1896, %v2213
        %v2215 = vlaneseq
        %v2216 = vshrl.u32 %v2215, 7
        %v2217 = vsub.s32 0, %v2216
        %v2218 = vrot.slane %v1897, %v2217
        %v2223 = vlaneseq
        %v2224 = vshrl.u32 %v2223, 7
        %v2225 = vsub.s32 0, %v2224
        %v2226 = vrot.slane %v1913, %v2225
        %v2227 = vlaneseq
        %v2228 = vshrl.u32 %v2227, 7
        %v2229 = vsub.s32 0, %v2228
        %v2230 = vrot.slane %v1920, %v2229
        %v2231 = vlaneseq
        %v2232 = vshrl.u32 %v2231, 7
        %v2233 = vsub.s32 0, %v2232
        %v2234 = vrot.slane %v1921, %v2233
        %v2235 = vlaneseq
        %v2236 = vshrl.u32 %v2235, 7
        %v2237 = vsub.s32 0, %v2236
        %v2238 = vrot.slane %v1922, %v2237
        %v2243 = vlaneseq
        %v2244 = vshrl.u32 %v2243, 7
        %v2245 = vsub.s32 0, %v2244
        %v2246 = vrot.slane %v1938, %v2245
        %v2247 = vlaneseq
        %v2248 = vshrl.u32 %v2247, 7
        %v2249 = vsub.s32 0, %v2248
        %v2250 = vrot.slane %v1945, %v2249
        %v2251 = vlaneseq
        %v2252 = vshrl.u32 %v2251, 7
        %v2253 = vsub.s32 0, %v2252
        %v2254 = vrot.slane %v1946, %v2253
        %v2255 = vlaneseq
        %v2256 = vshrl.u32 %v2255, 7
        %v2257 = vsub.s32 0, %v2256
        %v2258 = vrot.slane %v1947, %v2257
        %v2263 = vlaneseq
        %v2264 = vshrl.u32 %v2263, 7
        %v2265 = vsub.s32 0, %v2264
        %v2266 = vrot.slane %v1963, %v2265
        %v2267 = vlaneseq
        %v2268 = vshrl.u32 %v2267, 7
        %v2269 = vsub.s32 0, %v2268
        %v2270 = vrot.slane %v1970, %v2269
        %v2271 = vlaneseq
        %v2272 = vshrl.u32 %v2271, 7
        %v2273 = vsub.s32 0, %v2272
        %v2274 = vrot.slane %v1971, %v2273
        %v2275 = vlaneseq
        %v2276 = vshrl.u32 %v2275, 7
        %v2277 = vsub.s32 0, %v2276
        %v2278 = vrot.slane %v1972, %v2277
        %v2283 = vlaneseq
        %v2284 = vshrl.u32 %v2283, 7
        %v2285 = vsub.s32 0, %v2284
        %v2286 = vrot.slane %v1988, %v2285
        %v2287 = vlaneseq
        %v2288 = vshrl.u32 %v2287, 7
        %v2289 = vsub.s32 0, %v2288
        %v2290 = vrot.slane %v1995, %v2289
        %v2291 = vlaneseq
        %v2292 = vshrl.u32 %v2291, 7
        %v2293 = vsub.s32 0, %v2292
        %v2294 = vrot.slane %v1996, %v2293
        %v2295 = vlaneseq
        %v2296 = vshrl.u32 %v2295, 7
        %v2297 = vsub.s32 0, %v2296
        %v2298 = vrot.slane %v1997, %v2297
        %v2303 = vlaneseq
        %v2304 = vshrl.u32 %v2303, 7
        %v2305 = vsub.s32 0, %v2304
        %v2306 = vrot.slane %v2013, %v2305
        %v2307 = vlaneseq
        %v2308 = vshrl.u32 %v2307, 7
        %v2309 = vsub.s32 0, %v2308
        %v2310 = vrot.slane %v2020, %v2309
        %v2311 = vlaneseq
        %v2312 = vshrl.u32 %v2311, 7
        %v2313 = vsub.s32 0, %v2312
        %v2314 = vrot.slane %v2021, %v2313
        %v2315 = vlaneseq
        %v2316 = vshrl.u32 %v2315, 7
        %v2317 = vsub.s32 0, %v2316
        %v2318 = vrot.slane %v2022, %v2317
        %v2323 = vlaneseq
        %v2324 = vshrl.u32 %v2323, 7
        %v2325 = vsub.s32 0, %v2324
        %v2326 = vrot.slane %v2038, %v2325
        %v2327 = vlaneseq
        %v2328 = vshrl.u32 %v2327, 7
        %v2329 = vsub.s32 0, %v2328
        %v2330 = vrot.slane %v2045, %v2329
        %v2331 = vlaneseq
        %v2332 = vshrl.u32 %v2331, 7
        %v2333 = vsub.s32 0, %v2332
        %v2334 = vrot.slane %v2046, %v2333
        %v2335 = vlaneseq
        %v2336 = vshrl.u32 %v2335, 7
        %v2337 = vsub.s32 0, %v2336
        %v2338 = vrot.slane %v2047, %v2337
        %v2343 = vlaneseq
        %v2344 = vshrl.u32 %v2343, 7
        %v2345 = vsub.s32 0, %v2344
        %v2346 = vrot.slane %v2063, %v2345
        %v2347 = vlaneseq
        %v2348 = vshrl.u32 %v2347, 7
        %v2349 = vsub.s32 0, %v2348
        %v2350 = vrot.slane %v2070, %v2349
        %v2351 = vlaneseq
        %v2352 = vshrl.u32 %v2351, 7
        %v2353 = vsub.s32 0, %v2352
        %v2354 = vrot.slane %v2071, %v2353
        %v2355 = vlaneseq
        %v2356 = vshrl.u32 %v2355, 7
        %v2357 = vsub.s32 0, %v2356
        %v2358 = vrot.slane %v2072, %v2357
        %v2363 = vlaneseq
        %v2364 = vshrl.u32 %v2363, 7
        %v2365 = vsub.s32 0, %v2364
        %v2366 = vrot.slane %v2088, %v2365
        %v2367 = vlaneseq
        %v2368 = vshrl.u32 %v2367, 7
        %v2369 = vsub.s32 0, %v2368
        %v2370 = vrot.slane %v2095, %v2369
        %v2371 = vlaneseq
        %v2372 = vshrl.u32 %v2371, 7
        %v2373 = vsub.s32 0, %v2372
        %v2374 = vrot.slane %v2096, %v2373
        %v2375 = vlaneseq
        %v2376 = vshrl.u32 %v2375, 7
        %v2377 = vsub.s32 0, %v2376
        %v2378 = vrot.slane %v2097, %v2377
        %v2383 = vlaneseq
        %v2384 = vshrl.u32 %v2383, 7
        %v2385 = vsub.s32 0, %v2384
        %v2386 = vrot.slane %v2113, %v2385
        %v2387 = vlaneseq
        %v2388 = vshrl.u32 %v2387, 7
        %v2389 = vsub.s32 0, %v2388
        %v2390 = vrot.slane %v2120, %v2389
        %v2391 = vlaneseq
        %v2392 = vshrl.u32 %v2391, 7
        %v2393 = vsub.s32 0, %v2392
        %v2394 = vrot.slane %v2121, %v2393
        %v2395 = vlaneseq
        %v2396 = vshrl.u32 %v2395, 7
        %v2397 = vsub.s32 0, %v2396
        %v2398 = vrot.slane %v2122, %v2397
        %vm2403 = vcmask 1040384
        %v2404 = vsel %vm2403, 1.0, %v2126
        %v2405 = vsel %vm2403, 1.0, %v2130
        %v2406 = vsel %vm2403, 1.0, %v2134
        %v2407 = vsel %vm2403, 1.0, %v2138
        %vm2408 = vcmask 1041408
        %v2409 = vsel %vm2408, %v2404, %v2146
        %v2410 = vsel %vm2408, %v2405, %v2150
        %v2411 = vsel %vm2408, %v2406, %v2154
        %v2412 = vsel %vm2408, %v2407, %v2158
        %vm2413 = vcmask 1042432
        %v2414 = vsel %vm2413, %v2409, %v2166
        %v2415 = vsel %vm2413, %v2410, %v2170
        %v2416 = vsel %vm2413, %v2411, %v2174
        %v2417 = vsel %vm2413, %v2412, %v2178
        %vm2418 = vcmask 1043456
        %v2419 = vsel %vm2418, %v2414, %v2186
        %v2420 = vsel %vm2418, %v2415, %v2190
        %v2421 = vsel %vm2418, %v2416, %v2194
        %v2422 = vsel %vm2418, %v2417, %v2198
        %vm2423 = vcmask 1044480
        %v2424 = vsel %vm2423, %v2419, %v2206
        %v2425 = vsel %vm2423, %v2420, %v2210
        %v2426 = vsel %vm2423, %v2421, %v2214
        %v2427 = vsel %vm2423, %v2422, %v2218
        %vm2428 = vcmask 1045504
        %v2429 = vsel %vm2428, %v2424, %v2226
        %v2430 = vsel %vm2428, %v2425, %v2230
        %v2431 = vsel %vm2428, %v2426, %v2234
        %v2432 = vsel %vm2428, %v2427, %v2238
        %vm2433 = vcmask 1046528
        %v2434 = vsel %vm2433, %v2429, %v2246
        %v2435 = vsel %vm2433, %v2430, %v2250
        %v2436 = vsel %vm2433, %v2431, %v2254
        %v2437 = vsel %vm2433, %v2432, %v2258
        %v2438 = vsel %vm2403, 0.0, %v2266
        %v2439 = vsel %vm2403, 0.0, %v2270
        %v2440 = vsel %vm2403, 0.0, %v2274
        %v2441 = vsel %vm2403, 0.0, %v2278
        %v2442 = vsel %vm2408, %v2438, %v2286
        %v2443 = vsel %vm2408, %v2439, %v2290
        %v2444 = vsel %vm2408, %v2440, %v2294
        %v2445 = vsel %vm2408, %v2441, %v2298
        %v2446 = vsel %vm2413, %v2442, %v2306
        %v2447 = vsel %vm2413, %v2443, %v2310
        %v2448 = vsel %vm2413, %v2444, %v2314
        %v2449 = vsel %vm2413, %v2445, %v2318
        %v2450 = vsel %vm2418, %v2446, %v2326
        %v2451 = vsel %vm2418, %v2447, %v2330
        %v2452 = vsel %vm2418, %v2448, %v2334
        %v2453 = vsel %vm2418, %v2449, %v2338
        %v2454 = vsel %vm2423, %v2450, %v2346
        %v2455 = vsel %vm2423, %v2451, %v2350
        %v2456 = vsel %vm2423, %v2452, %v2354
        %v2457 = vsel %vm2423, %v2453, %v2358
        %v2458 = vsel %vm2428, %v2454, %v2366
        %v2459 = vsel %vm2428, %v2455, %v2370
        %v2460 = vsel %vm2428, %v2456, %v2374
        %v2461 = vsel %vm2428, %v2457, %v2378
        %v2462 = vsel %vm2433, %v2458, %v2386
        %v2463 = vsel %vm2433, %v2459, %v2390
        %v2464 = vsel %vm2433, %v2460, %v2394
        %v2465 = vsel %vm2433, %v2461, %v2398
        %v2466 = vld [vmem:[#allocation2] sm:$0xff]
        %v2467 = vld [vmem:[#allocation2 + $0x8] sm:$0xff]
        %v2468 = vld [vmem:[#allocation2 + $0x10] sm:$0xff]
        %v2469 = vld [vmem:[#allocation2 + $0x18] sm:$0xff]
        %v2470 = vld [vmem:[#allocation2 + $0x20] sm:$0xff]
        %v2471 = vld [vmem:[#allocation2 + $0x28] sm:$0xff]
        %v2472 = vld [vmem:[#allocation2 + $0x30] sm:$0xff]
        %v2473 = vld [vmem:[#allocation2 + $0x38] sm:$0xff]
        %2474 = vxpose.xlu0.b32.start [1/16] %v2434, 128
        %2475 = vxpose.xlu0.b32.cont [2/16] %v2462, 128
        %2476 = vxpose.xlu0.b32.cont [3/16] %v2435, 128
        %2477 = vxpose.xlu0.b32.cont [4/16] %v2463, 128
        %2478 = vxpose.xlu0.b32.cont [5/16] %v2436, 128
        %2479 = vxpose.xlu0.b32.cont [6/16] %v2464, 128
        %2480 = vxpose.xlu0.b32.cont [7/16] %v2437, 128
        %2481 = vxpose.xlu0.b32.cont [8/16] %v2465, 128
        %2482 = vxpose.xlu0.b32.cont [9/16] 0.0, 128
        %2483 = vxpose.xlu0.b32.cont [10/16] 0.0, 128
        %2484 = vxpose.xlu0.b32.cont [11/16] 0.0, 128
        %2485 = vxpose.xlu0.b32.cont [12/16] 0.0, 128
        %2486 = vxpose.xlu0.b32.cont [13/16] 0.0, 128
        %2487 = vxpose.xlu0.b32.cont [14/16] 0.0, 128
        %2488 = vxpose.xlu0.b32.cont [15/16] 0.0, 128
        %2489 = vxpose.xlu0.b32.end [16/16] 0.0, 128
        %v2490 = vpop.trf.xlu0
        %v2491 = vpop.trf.xlu0
        %v2492 = vpop.trf.xlu0
        %v2493 = vpop.trf.xlu0
        %v2494 = vpop.trf.xlu0
        %v2495 = vpop.trf.xlu0
        %v2496 = vpop.trf.xlu0
        %v2497 = vpop.trf.xlu0
        %v2498 = vpop.trf.xlu0
        %v2499 = vpop.trf.xlu0
        %v2500 = vpop.trf.xlu0
        %v2501 = vpop.trf.xlu0
        %v2502 = vpop.trf.xlu0
        %v2503 = vpop.trf.xlu0
        %v2504 = vpop.trf.xlu0
        %v2505 = vpop.trf.xlu0
        %vm2506 = vcmask 523264
        %v2508 = vsel %vm2506, %v2490, 0
        %v2511 = vsel %vm2506, %v2491, 0
        %2513 = vmatprep.subr.mxu0 0.0
        %2514 = vmatpush1.msra.mxu0 %v2466
        %2515 = vmatprep.subr.mxu0 0.0
        %2516 = vmatpush1.msra.mxu0 %v2467
        %2517 = vmatprep.subr.mxu0 0.0
        %2518 = vmatpush1.msra.mxu0 %v2468
        %2519 = vmatprep.subr.mxu0 0.0
        %2520 = vmatpush1.msra.mxu0 %v2469
        %2521 = vmatprep.subr.mxu0 0.0
        %2522 = vmatpush1.msra.mxu0 %v2470
        %2523 = vmatprep.subr.mxu0 0.0
        %2524 = vmatpush1.msra.mxu0 %v2471
        %2525 = vmatprep.subr.mxu0 0.0
        %2526 = vmatpush1.msra.mxu0 %v2472
        %2527 = vmatprep.subr.mxu0 0.0
        %2528 = vmatpush1.msra.mxu0 %v2473
        %2529 = vmatprep.subr.mxu0 0.0
        %2530 = vmatpush1.msra.mxu0 0.0
        %2531 = vmatprep.subr.mxu0 0.0
        %2532 = vmatpush1.msra.mxu0 0.0
        %2533 = vmatprep.subr.mxu0 0.0
        %2534 = vmatpush1.msra.mxu0 0.0
        %2535 = vmatprep.subr.mxu0 0.0
        %2536 = vmatpush1.msra.mxu0 0.0
        %2537 = vmatprep.subr.mxu0 0.0
        %2538 = vmatpush1.msra.mxu0 0.0
        %2539 = vmatprep.subr.mxu0 0.0
        %2540 = vmatpush1.msra.mxu0 0.0
        %2541 = vmatprep.subr.mxu0 0.0
        %2542 = vmatpush1.msra.mxu0 0.0
        %2543 = vmatprep.subr.mxu0 0.0
        %2544 = vmatpush1.msra.mxu0 0.0
        %2545 = vmatprep.subr.mxu0 0.0
        %2546 = vmatpush1.msra.mxu0 0.0
        %2547 = vmatprep.subr.mxu0 0.0
        %2548 = vmatpush1.msra.mxu0 0.0
        %2549 = vmatprep.subr.mxu0 0.0
        %2550 = vmatpush1.msra.mxu0 0.0
        %2551 = vmatprep.subr.mxu0 0.0
        %2552 = vmatpush1.msra.mxu0 0.0
        %2553 = vmatprep.subr.mxu0 0.0
        %2554 = vmatpush1.msra.mxu0 0.0
        %2555 = vmatprep.subr.mxu0 0.0
        %2556 = vmatpush1.msra.mxu0 0.0
        %2557 = vmatprep.subr.mxu0 0.0
        %2558 = vmatpush1.msra.mxu0 0.0
        %2559 = vmatprep.subr.mxu0 0.0
        %2560 = vmatpush1.msra.mxu0 0.0
        %2561 = vmatprep.subr.mxu0 0.0
        %2562 = vmatpush1.msra.mxu0 0.0
        %2563 = vmatprep.subr.mxu0 0.0
        %2564 = vmatpush1.msra.mxu0 0.0
        %2565 = vmatprep.subr.mxu0 0.0
        %2566 = vmatpush1.msra.mxu0 0.0
        %2567 = vmatprep.subr.mxu0 0.0
        %2568 = vmatpush1.msra.mxu0 0.0
        %2569 = vmatprep.subr.mxu0 0.0
        %2570 = vmatpush1.msra.mxu0 0.0
        %2571 = vmatprep.subr.mxu0 0.0
        %2572 = vmatpush1.msra.mxu0 0.0
        %2573 = vmatprep.subr.mxu0 0.0
        %2574 = vmatpush1.msra.mxu0 0.0
        %2575 = vmatprep.subr.mxu0 0.0
        %2576 = vmatpush1.msra.mxu0 0.0
        %2577 = vmatprep.mubr.f32.mxu0 0.0
        %2578 = vmatmul.mubr.f32.gmra.mrb[0].mxu0 %v2508
        %v2579 = vpop.f32.mrb[0].mxu0
        %v2580 = vadd.f32 0.0, %v2579
        %v2581 = vpop.f32.mrb[0].mxu0
        %2582 = vmatprep.mubr.f32.mxu0 0.0
        %2583 = vmatmul.mubr.f32.gmra.mrb[0].mxu0 %v2511
        %v2584 = vpop.f32.mrb[0].mxu0
        %v2585 = vadd.f32 0.0, %v2584
        %v2586 = vpop.f32.mrb[0].mxu0
        %2587 = vdwg.mxu0
        %vm2588 = vcmask 261120
        %2589 = vst.msk [vmem:[%s280] sm:$0xff] %vm2588, %v2580
        %2590 = vst.msk [vmem:[%s280 + $0x8] sm:$0xff] %vm2588, %v2585
        %s2591 = sand.u32 %s168, 1
        %s2592 = scalar_lea.sflag [#allocation4], %s2591
        %s2593 = sand.u32 %s168, 1
        %s2594 = smul.addr %s2593, 16
        %s2595 = scalar_lea.vmem [#allocation3], %s2594
        // Predicated region
        $region45: #{nfk_attention_pallas.1} parent=39 // pred_check
          %p2596 = pneg %p178
        $region46: #{nfk_attention_pallas.1} parent=39 // pred_check_branch
          %2598 = sbr.rel (%p2596) target = $region48
        $region47: #{nfk_attention_pallas.1} parent=39 // pred_region
          %s2599 = smul.u32 2, %s24
          %s2601 = ssub.s32 256, 256
          %2602 = vsyncadd %s2592, %s2601
          %s2603 = smul.addr %s23, 2
          %s2604 = sadd.s32 %s2599, %s2603
          %s2605 = smul.addr %s2604, 128
          %s2606 = scalar_lea.hbm %s5, %s2605
          %s2607 = sshll.u32 %s2595, 4
          %s2608 = int_to_ptr.vmem [resolvable:$true] %s2607
          %2613 = dma.vmem_to_hbm [thread:$0]  %s2608, 256, %s2606, %s2592, 128, 128, 8
        $region48: #{nfk_attention_pallas.1} parent=39 // pred_fallthru
          _
      $region40: #{nfk_attention_pallas.1} parent=5 // pred_fallthru
        _
      %p2614 = scmp.le.s32.totalorder 2, %s14
      // Predicated region
      $region49: #{nfk_attention_pallas.1} parent=5 // pred_check
        %p2615 = pneg %p2614
      $region50: #{nfk_attention_pallas.1} parent=5 // pred_check_branch
        %2617 = sbr.rel (%p2615) target = $region52
      $region51: #{nfk_attention_pallas.1} parent=5 // pred_region
        %s2618 = ssub.s32 %s14, 2
        // Predicated region
        $region53: #{nfk_attention_pallas.1} parent=51 // pred_check
          %p2619 = pneg %p184
        $region54: #{nfk_attention_pallas.1} parent=51 // pred_check_branch
          %2621 = sbr.rel (%p2619) target = $region56
        $region55: #{nfk_attention_pallas.1} parent=51 // pred_region
          %s2622 = sand.u32 %s169, 1
          %s2623 = scalar_lea.sflag [#allocation4], %s2622
          %s2624 = sand.u32 %s169, 1
          %s2625 = smul.addr %s2624, 16
          %s2626 = scalar_lea.vmem [#allocation3], %s2625
          %2627 = dma.done %s2623, 256
        $region56: #{nfk_attention_pallas.1} parent=51 // pred_fallthru
          _
      $region52: #{nfk_attention_pallas.1} parent=5 // pred_fallthru
        _
    $region6: #{nfk_attention_pallas.1} parent=1 // loop_footer
      %s18 = sadd.s32 1, %s14
    $region7: #{nfk_attention_pallas.1} parent=1 // loop_footer_branch
      %13 = sbr.rel target = $region3
    $region8: #{nfk_attention_pallas.1} parent=1 // loop_exit
      _
    %2628 = vsyncpa [#allocation4], 1
    %s2629 = scalar_lea.sflag [#allocation4], 1
    %2630 = vsyncpa %s2629, 1

</llo_original>
